<compile_context>
chip_gen: v7x
topology: tpu7x:2x2x1
jax: 0.10.0
libtpu: 0.0.40
codegen_flags: <defaults>
</compile_context>

<pallas_src>
import functools

import jax
import jax.numpy as jnp
from jax import lax
from jax.experimental import pallas as pl
from jax.experimental.pallas import tpu as pltpu

EPS = 1e-12


# ----------------------------------------------------------------------------
# Fused kernel: spectral-norm power iteration + sigma + conv-as-matmul (+bias)
# ----------------------------------------------------------------------------
def _sn_conv_kernel(x_ref, w2d_ref, wtap_ref, u_ref, v_ref, b_ref,
                    o_ref, un_ref, vn_ref,
                    *, H, W, Wp, KH, KW, power_iterations):
    del W  # output width cropping happens in the wrapper

    # --- spectral norm (recomputed per grid step; w2d is ~1.2 KB, two mat-vecs
    #     per iteration -> noise compared to even one DMA) ---------------------
    w2d = w2d_ref[...]                       # (C_out, K)
    u = u_ref[...]                           # (1, C_out) row vector
    v = v_ref[...]                           # (1, K)     row vector
    for _ in range(power_iterations):
        # v = l2normalize(W^T u)
        v = lax.dot_general(u, w2d, (((1,), (0,)), ((), ())),
                            preferred_element_type=jnp.float32)      # (1, K)
        v = v / (jnp.sqrt(jnp.sum(v * v)) + EPS)
        # u = l2normalize(W v)
        u = lax.dot_general(v, w2d, (((1,), (1,)), ((), ())),
                            preferred_element_type=jnp.float32)      # (1, C_out)
        u = u / (jnp.sqrt(jnp.sum(u * u)) + EPS)
    wv = lax.dot_general(v, w2d, (((1,), (1,)), ((), ())),
                         preferred_element_type=jnp.float32)         # (1, C_out)
    sigma = jnp.sum(u * wv)                                          # u . (W v)
    inv_sigma = 1.0 / sigma        # exact f32 (approx reciprocal ~1e-3 rel err)

    un_ref[0] = u                  # per-batch copy (identical across steps)
    vn_ref[0] = v

    # --- conv: accumulate KH*KW shifted-slice matmuls over the padded row-major
    #     flattening of the input; the "width" of the output is the padded width
    #     Wp, cropped to W in the wrapper -------------------------------------
    x = x_ref[0]                   # (C_in, flat_len)  single DMA of padded input
    L = H * Wp                     # over-wide output length
    acc = None
    for kh in range(KH):
        for kw in range(KW):
            off = kh * Wp + kw
            xs = x[:, off:off + L]                         # (C_in, L)
            wk = wtap_ref[kh * KW + kw]                    # (C_out, C_in)
            p = jnp.dot(wk, xs, preferred_element_type=jnp.float32)
            acc = p if acc is None else acc + p
    # scale by 1/sigma, add bias (bias is NOT spectrally normalized)
    o_ref[0] = (acc * inv_sigma + b_ref[...]).astype(o_ref.dtype)


def spectral_norm_conv2d(x, w_bar, bias, u, v, *, padding=1, power_iterations=1):
    """Returns (out NCHW, u_new, v_new) matching PyTorch SpectralNorm(Conv2d)."""
    B, C_in, H, W = x.shape
    C_out, _, KH, KW = w_bar.shape
    K = C_in * KH * KW
    Hp, Wp = H + 2 * padding, W + 2 * padding
    L = H * Wp                                   # over-wide (padded-width) output
    flat_len = (KH - 1) * Wp + (KW - 1) + L      # largest shifted slice end

    # Pad once (1x copy) and flatten spatially; this is the ONLY activation
    # materialization outside the kernel (no 9x im2col blowup).
    xp = jnp.pad(x, ((0, 0), (0, 0), (padding, padding), (padding, padding)))
    xf = xp.reshape(B, C_in, Hp * Wp)
    xf = jnp.pad(xf, ((0, 0), (0, 0), (0, flat_len - Hp * Wp)))

    # Weight views: 2-D (PyTorch w.view(height,-1) column order) for the power
    # iteration, and per-tap (tap, C_out, C_in) for the conv accumulation.
    w2d = w_bar.reshape(C_out, K)
    wtap = jnp.transpose(w_bar, (2, 3, 0, 1)).reshape(KH * KW, C_out, C_in)

    kernel = functools.partial(_sn_conv_kernel, H=H, W=W, Wp=Wp, KH=KH, KW=KW,
                               power_iterations=power_iterations)

    out_flat, u_new, v_new = pl.pallas_call(
        kernel,
        out_shape=(jax.ShapeDtypeStruct((B, C_out, L), jnp.float32),
                   jax.ShapeDtypeStruct((B, 1, C_out), jnp.float32),
                   jax.ShapeDtypeStruct((B, 1, K), jnp.float32)),
        grid=(B,),
        in_specs=[
            pl.BlockSpec((1, C_in, flat_len), lambda b: (b, 0, 0)),   # x (padded)
            pl.BlockSpec((C_out, K), lambda b: (0, 0)),               # w2d
            pl.BlockSpec((KH * KW, C_out, C_in), lambda b: (0, 0, 0)),  # per-tap w
            pl.BlockSpec((1, C_out), lambda b: (0, 0)),               # u
            pl.BlockSpec((1, K), lambda b: (0, 0)),                   # v
            pl.BlockSpec((C_out, 1), lambda b: (0, 0)),               # bias
        ],
        out_specs=(
            pl.BlockSpec((1, C_out, L), lambda b: (b, 0, 0)),         # conv out
            pl.BlockSpec((1, 1, C_out), lambda b: (b, 0, 0)),         # u_new
            pl.BlockSpec((1, 1, K), lambda b: (b, 0, 0)),             # v_new
        ),
        compiler_params=pltpu.CompilerParams(
            dimension_semantics=("parallel",)),
    )(xf, w2d, wtap, u.reshape(1, C_out), v.reshape(1, K),
      bias.reshape(C_out, 1))

    # Crop the padded-width columns and restore NCHW for the module contract.
    out = out_flat.reshape(B, C_out, H, Wp)[:, :, :, :W]
    return out, u_new[0, 0], v_new[0, 0]


# ----------------------------------------------------------------------------
# SpectralNorm(nn.Conv2d(4, 8, 3, padding=1)) equivalent
# ----------------------------------------------------------------------------
class SpectralNormConv2d:
    def __init__(self, key, in_ch, out_ch, kh=3, kw=3, padding=1,
                 power_iterations=1):
        k1, k2, k3, k4 = jax.random.split(key, 4)
        fan_in = in_ch * kh * kw
        bound = 1.0 / jnp.sqrt(jnp.float32(fan_in))
        self.w_bar = jax.random.uniform(k1, (out_ch, in_ch, kh, kw),
                                        jnp.float32, -bound, bound)
        self.bias = jax.random.uniform(k2, (out_ch,), jnp.float32, -bound, bound)
        u0 = jax.random.normal(k3, (out_ch,), jnp.float32)
        v0 = jax.random.normal(k4, (fan_in,), jnp.float32)
        self.u = u0 / (jnp.linalg.norm(u0) + EPS)
        self.v = v0 / (jnp.linalg.norm(v0) + EPS)
        self.padding = padding
        self.power_iterations = power_iterations

    def __call__(self, x):
        out, u_new, v_new = spectral_norm_conv2d(
            x, self.w_bar, self.bias, self.u, self.v,
            padding=self.padding, power_iterations=self.power_iterations)
        # PyTorch SpectralNorm mutates the u/v buffers every forward.
        # (Eager-only; under jit return these instead of mutating.)
        self.u, self.v = u_new, v_new
        return out


# ----------------------------------------------------------------------------
# Pure-JAX reference for correctness check
# ----------------------------------------------------------------------------
def ref_forward(x, w_bar, bias, u, v, power_iterations=1, padding=1):
    c_out = w_bar.shape[0]
    w2d = w_bar.reshape(c_out, -1)
    for _ in range(power_iterations):
        v = w2d.T @ u
        v = v / (jnp.linalg.norm(v) + EPS)
        u = w2d @ v
        u = u / (jnp.linalg.norm(u) + EPS)
    sigma = u @ (w2d @ v)
    wn = w_bar / sigma
    out = lax.conv_general_dilated(x, wn, (1, 1),
                                   [(padding, padding), (padding, padding)],
                                   dimension_numbers=('NCHW', 'OIHW', 'NCHW'))
    return out + bias[None, :, None, None], u, v


if __name__ == "__main__":
    key = jax.random.PRNGKey(0)
    k_mod, k_x = jax.random.split(key)

    B, C_in, H, W = 2, 4, 16, 16
    C_out = 8

    module = SpectralNormConv2d(k_mod, C_in, C_out, kh=3, kw=3,
                                padding=1, power_iterations=1)
    u0, v0 = module.u, module.v  # capture before forward (forward mutates them)
    x = jax.random.normal(k_x, (B, C_in, H, W), jnp.float32)

    y = module(x)
    y = jax.block_until_ready(y)

    y_ref, u_ref, v_ref = ref_forward(x, module.w_bar, module.bias, u0, v0,
                                      power_iterations=1, padding=1)

    assert y.shape == (B, C_out, H, W)
    assert jnp.allclose(y, y_ref, rtol=1e-4, atol=1e-4), (
        float(jnp.max(jnp.abs(y - y_ref))))
    assert jnp.allclose(module.u, u_ref, rtol=1e-4, atol=1e-4)
    assert jnp.allclose(module.v, v_ref, rtol=1e-4, atol=1e-4)
    print("KERNEL_OK")
</pallas_src>

<mosaic_0001>
module attributes {stable_mosaic.version = 11 : i64} {
  func.func @_sn_conv_kernel(%arg0: i32, %arg1: memref<1x4x326xf32, #tpu.memory_space<vmem>>, %arg2: memref<8x36xf32, #tpu.memory_space<vmem>>, %arg3: memref<9x8x4xf32, #tpu.memory_space<vmem>>, %arg4: memref<1x8xf32, #tpu.memory_space<vmem>>, %arg5: memref<1x36xf32, #tpu.memory_space<vmem>>, %arg6: memref<8x1xf32, #tpu.memory_space<vmem>>, %arg7: memref<1x8x288xf32, #tpu.memory_space<vmem>>, %arg8: memref<1x1x8xf32, #tpu.memory_space<vmem>>, %arg9: memref<1x1x36xf32, #tpu.memory_space<vmem>>) attributes {dimension_semantics = [#tpu.dimension_semantics<parallel>], iteration_bounds = array<i64: 2>, scalar_prefetch = 0 : i64, scratch_operands = 0 : i64, tpu.core_type = #tpu.core_type<tc>, window_params = [{transform_indices = @transform_0, window_bounds = array<i64: 1, 4, 326>}, {pipeline_mode = #tpu.pipeline_mode<synchronous>, transform_indices = @transform_1, window_bounds = array<i64: 8, 36>}, {pipeline_mode = #tpu.pipeline_mode<synchronous>, transform_indices = @transform_2, window_bounds = array<i64: 9, 8, 4>}, {pipeline_mode = #tpu.pipeline_mode<synchronous>, transform_indices = @transform_3, window_bounds = array<i64: 1, 8>}, {pipeline_mode = #tpu.pipeline_mode<synchronous>, transform_indices = @transform_4, window_bounds = array<i64: 1, 36>}, {pipeline_mode = #tpu.pipeline_mode<synchronous>, transform_indices = @transform_5, window_bounds = array<i64: 8, 1>}, {transform_indices = @transform_6, window_bounds = array<i64: 1, 8, 288>}, {transform_indices = @transform_7, window_bounds = array<i64: 1, 1, 8>}, {transform_indices = @transform_8, window_bounds = array<i64: 1, 1, 36>}]} {
    %c0 = arith.constant 0 : index
    %c0_0 = arith.constant 0 : index
    %0 = vector.load %arg2[%c0, %c0_0] : memref<8x36xf32, #tpu.memory_space<vmem>>, vector<8x36xf32>
    %c0_1 = arith.constant 0 : index
    %c0_2 = arith.constant 0 : index
    %1 = vector.load %arg4[%c0_1, %c0_2] : memref<1x8xf32, #tpu.memory_space<vmem>>, vector<1x8xf32>
    %cst = arith.constant dense<0.000000e+00> : vector<1x36xf32>
    %2 = tpu.matmul %1, %0, %cst {dimension_numbers = #tpu.dot_dimension_numbers<[1], [0], [0], [1], [0, 0, 1, 1], [], []>} : vector<1x8xf32>, vector<8x36xf32>, vector<1x36xf32> -> vector<1x36xf32>
    %3 = arith.mulf %2, %2 : vector<1x36xf32>
    %4 = vector.shape_cast %3 : vector<1x36xf32> to vector<1x1x36xf32>
    %cst_3 = arith.constant dense<0.000000e+00> : vector<1xf32>
    %5 = vector.multi_reduction <add>, %4, %cst_3 [1, 2] : vector<1x1x36xf32> to vector<1xf32>
    %6 = vector.shape_cast %5 : vector<1xf32> to vector<1x1x1xf32>
    %7 = vector.extract %6[0, 0, 0] : f32 from vector<1x1x1xf32>
    %8 = math.sqrt %7 : f32
    %cst_4 = arith.constant 9.99999996E-13 : f32
    %9 = arith.addf %8, %cst_4 : f32
    %10 = vector.broadcast %9 : f32 to vector<1x36xf32>
    %11 = arith.divf %2, %10 : vector<1x36xf32>
    %cst_5 = arith.constant dense<0.000000e+00> : vector<1x8xf32>
    %12 = tpu.matmul %11, %0, %cst_5 {dimension_numbers = #tpu.dot_dimension_numbers<[1], [1], [0], [0], [0, 0, 1, 0], [], []>} : vector<1x36xf32>, vector<8x36xf32>, vector<1x8xf32> -> vector<1x8xf32>
    %13 = arith.mulf %12, %12 : vector<1x8xf32>
    %14 = vector.shape_cast %13 : vector<1x8xf32> to vector<1x1x8xf32>
    %cst_6 = arith.constant dense<0.000000e+00> : vector<1xf32>
    %15 = vector.multi_reduction <add>, %14, %cst_6 [1, 2] : vector<1x1x8xf32> to vector<1xf32>
    %16 = vector.shape_cast %15 : vector<1xf32> to vector<1x1x1xf32>
    %17 = vector.extract %16[0, 0, 0] : f32 from vector<1x1x1xf32>
    %18 = math.sqrt %17 : f32
    %cst_7 = arith.constant 9.99999996E-13 : f32
    %19 = arith.addf %18, %cst_7 : f32
    %20 = vector.broadcast %19 : f32 to vector<1x8xf32>
    %21 = arith.divf %12, %20 : vector<1x8xf32>
    %cst_8 = arith.constant dense<0.000000e+00> : vector<1x8xf32>
    %22 = tpu.matmul %11, %0, %cst_8 {dimension_numbers = #tpu.dot_dimension_numbers<[1], [1], [0], [0], [0, 0, 1, 0], [], []>} : vector<1x36xf32>, vector<8x36xf32>, vector<1x8xf32> -> vector<1x8xf32>
    %23 = arith.mulf %21, %22 : vector<1x8xf32>
    %24 = vector.shape_cast %23 : vector<1x8xf32> to vector<1x1x8xf32>
    %cst_9 = arith.constant dense<0.000000e+00> : vector<1xf32>
    %25 = vector.multi_reduction <add>, %24, %cst_9 [1, 2] : vector<1x1x8xf32> to vector<1xf32>
    %26 = vector.shape_cast %25 : vector<1xf32> to vector<1x1x1xf32>
    %27 = vector.extract %26[0, 0, 0] : f32 from vector<1x1x1xf32>
    %cst_10 = arith.constant 1.000000e+00 : f32
    %28 = arith.divf %cst_10, %27 : f32
    %c0_11 = arith.constant 0 : index
    %c0_12 = arith.constant 0 : index
    %c0_13 = arith.constant 0 : index
    %29 = vector.load %arg8[%c0_11, %c0_12, %c0_13] : memref<1x1x8xf32, #tpu.memory_space<vmem>>, vector<1x1x8xf32>
    %30 = vector.shape_cast %29 : vector<1x1x8xf32> to vector<1x8xf32>
    %31 = vector.shape_cast %21 : vector<1x8xf32> to vector<1x1x8xf32>
    tpu.vector_store %arg8[%c0_11, %c0_12, %c0_13], %31 {strides = array<i32>} : memref<1x1x8xf32, #tpu.memory_space<vmem>>, vector<1x1x8xf32>,
    %c0_14 = arith.constant 0 : index
    %c0_15 = arith.constant 0 : index
    %c0_16 = arith.constant 0 : index
    %32 = vector.load %arg9[%c0_14, %c0_15, %c0_16] : memref<1x1x36xf32, #tpu.memory_space<vmem>>, vector<1x1x36xf32>
    %33 = vector.shape_cast %32 : vector<1x1x36xf32> to vector<1x36xf32>
    %34 = vector.shape_cast %11 : vector<1x36xf32> to vector<1x1x36xf32>
    tpu.vector_store %arg9[%c0_14, %c0_15, %c0_16], %34 {strides = array<i32>} : memref<1x1x36xf32, #tpu.memory_space<vmem>>, vector<1x1x36xf32>,
    %c0_17 = arith.constant 0 : index
    %c0_18 = arith.constant 0 : index
    %c0_19 = arith.constant 0 : index
    %35 = vector.load %arg1[%c0_17, %c0_18, %c0_19] : memref<1x4x326xf32, #tpu.memory_space<vmem>>, vector<1x4x326xf32>
    %36 = vector.shape_cast %35 : vector<1x4x326xf32> to vector<4x326xf32>
    %37 = vector.extract_strided_slice %36 {offsets = [0, 0], sizes = [4, 288], strides = [1, 1]} : vector<4x326xf32> to vector<4x288xf32>
    %c0_20 = arith.constant 0 : index
    %c0_21 = arith.constant 0 : index
    %c0_22 = arith.constant 0 : index
    %38 = vector.load %arg3[%c0_20, %c0_21, %c0_22] : memref<9x8x4xf32, #tpu.memory_space<vmem>>, vector<1x8x4xf32>
    %39 = vector.shape_cast %38 : vector<1x8x4xf32> to vector<8x4xf32>
    %cst_23 = arith.constant dense<0.000000e+00> : vector<8x288xf32>
    %40 = tpu.matmul %39, %37, %cst_23 {dimension_numbers = #tpu.dot_dimension_numbers<[1], [0], [0], [1], [0, 0, 1, 1], [], []>} : vector<8x4xf32>, vector<4x288xf32>, vector<8x288xf32> -> vector<8x288xf32>
    %41 = vector.extract_strided_slice %36 {offsets = [0, 1], sizes = [4, 288], strides = [1, 1]} : vector<4x326xf32> to vector<4x288xf32>
    %c1 = arith.constant 1 : index
    %c0_24 = arith.constant 0 : index
    %c0_25 = arith.constant 0 : index
    %42 = vector.load %arg3[%c1, %c0_24, %c0_25] : memref<9x8x4xf32, #tpu.memory_space<vmem>>, vector<1x8x4xf32>
    %43 = vector.shape_cast %42 : vector<1x8x4xf32> to vector<8x4xf32>
    %cst_26 = arith.constant dense<0.000000e+00> : vector<8x288xf32>
    %44 = tpu.matmul %43, %41, %cst_26 {dimension_numbers = #tpu.dot_dimension_numbers<[1], [0], [0], [1], [0, 0, 1, 1], [], []>} : vector<8x4xf32>, vector<4x288xf32>, vector<8x288xf32> -> vector<8x288xf32>
    %45 = arith.addf %40, %44 : vector<8x288xf32>
    %46 = vector.extract_strided_slice %36 {offsets = [0, 2], sizes = [4, 288], strides = [1, 1]} : vector<4x326xf32> to vector<4x288xf32>
    %c2 = arith.constant 2 : index
    %c0_27 = arith.constant 0 : index
    %c0_28 = arith.constant 0 : index
    %47 = vector.load %arg3[%c2, %c0_27, %c0_28] : memref<9x8x4xf32, #tpu.memory_space<vmem>>, vector<1x8x4xf32>
    %48 = vector.shape_cast %47 : vector<1x8x4xf32> to vector<8x4xf32>
    %cst_29 = arith.constant dense<0.000000e+00> : vector<8x288xf32>
    %49 = tpu.matmul %48, %46, %cst_29 {dimension_numbers = #tpu.dot_dimension_numbers<[1], [0], [0], [1], [0, 0, 1, 1], [], []>} : vector<8x4xf32>, vector<4x288xf32>, vector<8x288xf32> -> vector<8x288xf32>
    %50 = arith.addf %45, %49 : vector<8x288xf32>
    %51 = vector.extract_strided_slice %36 {offsets = [0, 18], sizes = [4, 288], strides = [1, 1]} : vector<4x326xf32> to vector<4x288xf32>
    %c3 = arith.constant 3 : index
    %c0_30 = arith.constant 0 : index
    %c0_31 = arith.constant 0 : index
    %52 = vector.load %arg3[%c3, %c0_30, %c0_31] : memref<9x8x4xf32, #tpu.memory_space<vmem>>, vector<1x8x4xf32>
    %53 = vector.shape_cast %52 : vector<1x8x4xf32> to vector<8x4xf32>
    %cst_32 = arith.constant dense<0.000000e+00> : vector<8x288xf32>
    %54 = tpu.matmul %53, %51, %cst_32 {dimension_numbers = #tpu.dot_dimension_numbers<[1], [0], [0], [1], [0, 0, 1, 1], [], []>} : vector<8x4xf32>, vector<4x288xf32>, vector<8x288xf32> -> vector<8x288xf32>
    %55 = arith.addf %50, %54 : vector<8x288xf32>
    %56 = vector.extract_strided_slice %36 {offsets = [0, 19], sizes = [4, 288], strides = [1, 1]} : vector<4x326xf32> to vector<4x288xf32>
    %c4 = arith.constant 4 : index
    %c0_33 = arith.constant 0 : index
    %c0_34 = arith.constant 0 : index
    %57 = vector.load %arg3[%c4, %c0_33, %c0_34] : memref<9x8x4xf32, #tpu.memory_space<vmem>>, vector<1x8x4xf32>
    %58 = vector.shape_cast %57 : vector<1x8x4xf32> to vector<8x4xf32>
    %cst_35 = arith.constant dense<0.000000e+00> : vector<8x288xf32>
    %59 = tpu.matmul %58, %56, %cst_35 {dimension_numbers = #tpu.dot_dimension_numbers<[1], [0], [0], [1], [0, 0, 1, 1], [], []>} : vector<8x4xf32>, vector<4x288xf32>, vector<8x288xf32> -> vector<8x288xf32>
    %60 = arith.addf %55, %59 : vector<8x288xf32>
    %61 = vector.extract_strided_slice %36 {offsets = [0, 20], sizes = [4, 288], strides = [1, 1]} : vector<4x326xf32> to vector<4x288xf32>
    %c5 = arith.constant 5 : index
    %c0_36 = arith.constant 0 : index
    %c0_37 = arith.constant 0 : index
    %62 = vector.load %arg3[%c5, %c0_36, %c0_37] : memref<9x8x4xf32, #tpu.memory_space<vmem>>, vector<1x8x4xf32>
    %63 = vector.shape_cast %62 : vector<1x8x4xf32> to vector<8x4xf32>
    %cst_38 = arith.constant dense<0.000000e+00> : vector<8x288xf32>
    %64 = tpu.matmul %63, %61, %cst_38 {dimension_numbers = #tpu.dot_dimension_numbers<[1], [0], [0], [1], [0, 0, 1, 1], [], []>} : vector<8x4xf32>, vector<4x288xf32>, vector<8x288xf32> -> vector<8x288xf32>
    %65 = arith.addf %60, %64 : vector<8x288xf32>
    %66 = vector.extract_strided_slice %36 {offsets = [0, 36], sizes = [4, 288], strides = [1, 1]} : vector<4x326xf32> to vector<4x288xf32>
    %c6 = arith.constant 6 : index
    %c0_39 = arith.constant 0 : index
    %c0_40 = arith.constant 0 : index
    %67 = vector.load %arg3[%c6, %c0_39, %c0_40] : memref<9x8x4xf32, #tpu.memory_space<vmem>>, vector<1x8x4xf32>
    %68 = vector.shape_cast %67 : vector<1x8x4xf32> to vector<8x4xf32>
    %cst_41 = arith.constant dense<0.000000e+00> : vector<8x288xf32>
    %69 = tpu.matmul %68, %66, %cst_41 {dimension_numbers = #tpu.dot_dimension_numbers<[1], [0], [0], [1], [0, 0, 1, 1], [], []>} : vector<8x4xf32>, vector<4x288xf32>, vector<8x288xf32> -> vector<8x288xf32>
    %70 = arith.addf %65, %69 : vector<8x288xf32>
    %71 = vector.extract_strided_slice %36 {offsets = [0, 37], sizes = [4, 288], strides = [1, 1]} : vector<4x326xf32> to vector<4x288xf32>
    %c7 = arith.constant 7 : index
    %c0_42 = arith.constant 0 : index
    %c0_43 = arith.constant 0 : index
    %72 = vector.load %arg3[%c7, %c0_42, %c0_43] : memref<9x8x4xf32, #tpu.memory_space<vmem>>, vector<1x8x4xf32>
    %73 = vector.shape_cast %72 : vector<1x8x4xf32> to vector<8x4xf32>
    %cst_44 = arith.constant dense<0.000000e+00> : vector<8x288xf32>
    %74 = tpu.matmul %73, %71, %cst_44 {dimension_numbers = #tpu.dot_dimension_numbers<[1], [0], [0], [1], [0, 0, 1, 1], [], []>} : vector<8x4xf32>, vector<4x288xf32>, vector<8x288xf32> -> vector<8x288xf32>
    %75 = arith.addf %70, %74 : vector<8x288xf32>
    %76 = vector.extract_strided_slice %36 {offsets = [0, 38], sizes = [4, 288], strides = [1, 1]} : vector<4x326xf32> to vector<4x288xf32>
    %c8 = arith.constant 8 : index
    %c0_45 = arith.constant 0 : index
    %c0_46 = arith.constant 0 : index
    %77 = vector.load %arg3[%c8, %c0_45, %c0_46] : memref<9x8x4xf32, #tpu.memory_space<vmem>>, vector<1x8x4xf32>
    %78 = vector.shape_cast %77 : vector<1x8x4xf32> to vector<8x4xf32>
    %cst_47 = arith.constant dense<0.000000e+00> : vector<8x288xf32>
    %79 = tpu.matmul %78, %76, %cst_47 {dimension_numbers = #tpu.dot_dimension_numbers<[1], [0], [0], [1], [0, 0, 1, 1], [], []>} : vector<8x4xf32>, vector<4x288xf32>, vector<8x288xf32> -> vector<8x288xf32>
    %80 = arith.addf %75, %79 : vector<8x288xf32>
    %81 = vector.broadcast %28 : f32 to vector<8x288xf32>
    %82 = arith.mulf %80, %81 : vector<8x288xf32>
    %c0_48 = arith.constant 0 : index
    %c0_49 = arith.constant 0 : index
    %83 = vector.load %arg6[%c0_48, %c0_49] : memref<8x1xf32, #tpu.memory_space<vmem>>, vector<8x1xf32>
    %84 = vector.broadcast %83 : vector<8x1xf32> to vector<8x288xf32>
    %85 = arith.addf %82, %84 : vector<8x288xf32>
    %c0_50 = arith.constant 0 : index
    %c0_51 = arith.constant 0 : index
    %c0_52 = arith.constant 0 : index
    %86 = vector.load %arg7[%c0_50, %c0_51, %c0_52] : memref<1x8x288xf32, #tpu.memory_space<vmem>>, vector<1x8x288xf32>
    %87 = vector.shape_cast %86 : vector<1x8x288xf32> to vector<8x288xf32>
    %88 = vector.shape_cast %85 : vector<8x288xf32> to vector<1x8x288xf32>
    tpu.vector_store %arg7[%c0_50, %c0_51, %c0_52], %88 {strides = array<i32>} : memref<1x8x288xf32, #tpu.memory_space<vmem>>, vector<1x8x288xf32>,
    return
  }
  func.func @transform_0(%arg0: i32) -> (i32, i32, i32) {
    %c0_i32 = arith.constant 0 : i32
    %c0_i32_0 = arith.constant 0 : i32
    %c0_i32_1 = arith.constant 0 : i32
    return %arg0, %c0_i32, %c0_i32_0 : i32, i32, i32
  }
  func.func @transform_1(%arg0: i32) -> (i32, i32) {
    %c0_i32 = arith.constant 0 : i32
    %c0_i32_0 = arith.constant 0 : i32
    %c0_i32_1 = arith.constant 0 : i32
    return %c0_i32, %c0_i32_0 : i32, i32
  }
  func.func @transform_2(%arg0: i32) -> (i32, i32, i32) {
    %c0_i32 = arith.constant 0 : i32
    %c0_i32_0 = arith.constant 0 : i32
    %c0_i32_1 = arith.constant 0 : i32
    %c0_i32_2 = arith.constant 0 : i32
    return %c0_i32, %c0_i32_0, %c0_i32_1 : i32, i32, i32
  }
  func.func @transform_3(%arg0: i32) -> (i32, i32) {
    %c0_i32 = arith.constant 0 : i32
    %c0_i32_0 = arith.constant 0 : i32
    %c0_i32_1 = arith.constant 0 : i32
    return %c0_i32, %c0_i32_0 : i32, i32
  }
  func.func @transform_4(%arg0: i32) -> (i32, i32) {
    %c0_i32 = arith.constant 0 : i32
    %c0_i32_0 = arith.constant 0 : i32
    %c0_i32_1 = arith.constant 0 : i32
    return %c0_i32, %c0_i32_0 : i32, i32
  }
  func.func @transform_5(%arg0: i32) -> (i32, i32) {
    %c0_i32 = arith.constant 0 : i32
    %c0_i32_0 = arith.constant 0 : i32
    %c0_i32_1 = arith.constant 0 : i32
    return %c0_i32, %c0_i32_0 : i32, i32
  }
  func.func @transform_6(%arg0: i32) -> (i32, i32, i32) {
    %c0_i32 = arith.constant 0 : i32
    %c0_i32_0 = arith.constant 0 : i32
    %c0_i32_1 = arith.constant 0 : i32
    return %arg0, %c0_i32, %c0_i32_0 : i32, i32, i32
  }
  func.func @transform_7(%arg0: i32) -> (i32, i32, i32) {
    %c0_i32 = arith.constant 0 : i32
    %c0_i32_0 = arith.constant 0 : i32
    %c0_i32_1 = arith.constant 0 : i32
    return %arg0, %c0_i32, %c0_i32_0 : i32, i32, i32
  }
  func.func @transform_8(%arg0: i32) -> (i32, i32, i32) {
    %c0_i32 = arith.constant 0 : i32
    %c0_i32_0 = arith.constant 0 : i32
    %c0_i32_1 = arith.constant 0 : i32
    return %arg0, %c0_i32, %c0_i32_0 : i32, i32, i32
  }
}

</mosaic_0001>

<llo_original>
// kernel: tpu_custom_call.1
$region0: #{tpu_custom_call.1}
  #allocation0 [shape = 'u32[]', space=smem, size = 0x4, offset = 0x4, fixed_abs, tag = 'smem constant byte address 0x4 - core index']
  #allocation1 [shape = 'u32[144,128]{1,0:T(1,128)}', space=vmem, size = 0x12000, scoped, tag = 'internal scratch']
  %s0 = inlined_call_operand.vmem [shape: f32[2,4,326], index: 0, kind: input, shape index: {}]
  %s1 = inlined_call_operand.vmem [shape: f32[8,36], index: 1, kind: input, shape index: {}]
  %s2 = inlined_call_operand.vmem [shape: f32[9,8,4], index: 2, kind: input, shape index: {}]
  %s3 = inlined_call_operand.vmem [shape: f32[1,8], index: 3, kind: input, shape index: {}]
  %s4 = inlined_call_operand.vmem [shape: f32[1,36], index: 4, kind: input, shape index: {}]
  %s5 = inlined_call_operand.vmem [shape: f32[8,1], index: 5, kind: input, shape index: {}]
  %s6 = inlined_call_operand.hbm [shape: f32[2,8,288], index: 6, kind: output, shape index: {0}]
  %s7 = inlined_call_operand.hbm [shape: f32[2,1,8], index: 7, kind: output, shape index: {1}]
  %s8 = inlined_call_operand.hbm [shape: f32[2,1,36], index: 8, kind: output, shape index: {2}]
  %9 = xla_tuple %s6, %s7, %s8
  %s10 = sld [smem:[#allocation0]]
  $region73: #{tpu_custom_call.1} parent=0
    _
  %s12 = ssub.s32 1, %s10
  %s13 = scalar_select 0, %s12, %s10
  $region1: #{tpu_custom_call.1} parent=0
    #allocation2 [shape = 'u8[24576]{0}', space=vmem, size = 0x6000, scoped, tag = 'output window, operand 0']
    #allocation3 [shape = 's32[2]{0}', space=sflag, size = 0x8, scoped, tag = 'scoped memory for tpu_custom_call.1']
    #allocation4 [shape = 'u8[1024]{0}', space=vmem, size = 0x400, scoped, tag = 'output window, operand 1']
    #allocation5 [shape = 's32[2]{0}', space=sflag, size = 0x8, scoped, tag = 'scoped memory for tpu_custom_call.1']
    #allocation6 [shape = 'u8[1024]{0}', space=vmem, size = 0x400, scoped, tag = 'output window, operand 2']
    %14 = vsyncpa [#allocation3], 0
    %s15 = scalar_lea.sflag [#allocation3], 1
    %16 = vsyncpa %s15, 0
    %17 = vsyncpa [#allocation5], 0
    %s18 = scalar_lea.sflag [#allocation5], 1
    %19 = vsyncpa %s18, 0
    loop: start=0, step=1, limit=4
    $region2: #{tpu_custom_call.1} parent=1 // loop_pre_header
      _
    $region3: #{tpu_custom_call.1} parent=1 // loop_header
      %s21 = sphi 0, %s25
      %p22 = scmp.ge.s32.totalorder %s21, 4
      %s31 = sphi 0, %s33
      %s34 = sphi 0, %s31
      %s35 = sphi 0, %s34
      %s51 = sphi 0, %s35
      %s55 = sphi 0, %s55
      %s57 = sphi 0, %s55
      %s58 = sphi 0, %s57
      %s72 = sphi 0, %s58
      %s76 = sphi 0, %s76
      %s78 = sphi 0, %s76
      %s79 = sphi 0, %s78
      %s93 = sphi 0, %s79
      %s97 = sphi 0, %s97
      %s99 = sphi 0, %s97
      %s100 = sphi 0, %s99
      %s114 = sphi 0, %s100
      %s118 = sphi 0, %s118
      %s120 = sphi 0, %s118
      %s121 = sphi 0, %s120
      %s135 = sphi 0, %s121
      %s139 = sphi 0, %s139
      %s141 = sphi 0, %s139
      %s142 = sphi 0, %s141
      %s156 = sphi 0, %s142
      %s162 = sphi 0, %s164
      %s165 = sphi 0, %s162
      %s166 = sphi 0, %s165
      %s182 = sphi 0, %s166
      %s188 = sphi 0, %s190
      %s191 = sphi 0, %s188
      %s192 = sphi 0, %s191
      %s208 = sphi 0, %s192
      %s214 = sphi 0, %s216
      %s217 = sphi 0, %s214
      %s218 = sphi 0, %s217
      %s234 = sphi 0, %s218
    $region4: #{tpu_custom_call.1} parent=1 // loop_header_branch
      %24 = sbr.rel (%p22) target = $region8
    $region5: #{tpu_custom_call.1} parent=1 // loop_body
      %s26 = ssub.s32 %s21, 1
      %s27 = ssub.s32 %s21, 2
      %s28 = sadd.s32 %s21, 1
      %s29 = ssub.s32 %s21, %s28
      %p30 = scmp.eq.s32.totalorder %s29, 0
      %s32 = sadd.s32 %s31, 1
      %s33 = scalar_select %p30, %s31, %s32
      %p36 = pneg %p30
      %p37 = scmp.eq.s32.totalorder %s21, 1
      %p38 = por %p36, %p37
      %p39 = scmp.ne.s32.totalorder %s31, %s34
      %p40 = scmp.eq.s32.totalorder %s21, 0
      %p41 = por %p39, %p40
      %p42 = scmp.ne.s32.totalorder %s31, %s34
      %p43 = scmp.eq.s32.totalorder %s26, 1
      %p44 = por %p42, %p43
      %p45 = scmp.ne.s32.totalorder %s34, %s35
      %p46 = scmp.eq.s32.totalorder %s26, 0
      %p47 = por %p45, %p46
      %p48 = scmp.ne.s32.totalorder %s34, %s35
      %p49 = scmp.eq.s32.totalorder %s27, 1
      %p50 = por %p48, %p49
      %p52 = scmp.ne.s32.totalorder %s35, %s51
      %p53 = scmp.eq.s32.totalorder %s27, 0
      %p54 = por %p52, %p53
      %s56 = sadd.s32 %s55, 1
      %p59 = scmp.eq.s32.totalorder %s21, 1
      %p60 = scmp.ne.s32.totalorder %s55, %s57
      %p61 = scmp.eq.s32.totalorder %s21, 0
      %p62 = por %p60, %p61
      %p63 = scmp.ne.s32.totalorder %s55, %s57
      %p64 = scmp.eq.s32.totalorder %s26, 1
      %p65 = por %p63, %p64
      %p66 = scmp.ne.s32.totalorder %s57, %s58
      %p67 = scmp.eq.s32.totalorder %s26, 0
      %p68 = por %p66, %p67
      %p69 = scmp.ne.s32.totalorder %s57, %s58
      %p70 = scmp.eq.s32.totalorder %s27, 1
      %p71 = por %p69, %p70
      %p73 = scmp.ne.s32.totalorder %s58, %s72
      %p74 = scmp.eq.s32.totalorder %s27, 0
      %p75 = por %p73, %p74
      %s77 = sadd.s32 %s76, 1
      %p80 = scmp.eq.s32.totalorder %s21, 1
      %p81 = scmp.ne.s32.totalorder %s76, %s78
      %p82 = scmp.eq.s32.totalorder %s21, 0
      %p83 = por %p81, %p82
      %p84 = scmp.ne.s32.totalorder %s76, %s78
      %p85 = scmp.eq.s32.totalorder %s26, 1
      %p86 = por %p84, %p85
      %p87 = scmp.ne.s32.totalorder %s78, %s79
      %p88 = scmp.eq.s32.totalorder %s26, 0
      %p89 = por %p87, %p88
      %p90 = scmp.ne.s32.totalorder %s78, %s79
      %p91 = scmp.eq.s32.totalorder %s27, 1
      %p92 = por %p90, %p91
      %p94 = scmp.ne.s32.totalorder %s79, %s93
      %p95 = scmp.eq.s32.totalorder %s27, 0
      %p96 = por %p94, %p95
      %s98 = sadd.s32 %s97, 1
      %p101 = scmp.eq.s32.totalorder %s21, 1
      %p102 = scmp.ne.s32.totalorder %s97, %s99
      %p103 = scmp.eq.s32.totalorder %s21, 0
      %p104 = por %p102, %p103
      %p105 = scmp.ne.s32.totalorder %s97, %s99
      %p106 = scmp.eq.s32.totalorder %s26, 1
      %p107 = por %p105, %p106
      %p108 = scmp.ne.s32.totalorder %s99, %s100
      %p109 = scmp.eq.s32.totalorder %s26, 0
      %p110 = por %p108, %p109
      %p111 = scmp.ne.s32.totalorder %s99, %s100
      %p112 = scmp.eq.s32.totalorder %s27, 1
      %p113 = por %p111, %p112
      %p115 = scmp.ne.s32.totalorder %s100, %s114
      %p116 = scmp.eq.s32.totalorder %s27, 0
      %p117 = por %p115, %p116
      %s119 = sadd.s32 %s118, 1
      %p122 = scmp.eq.s32.totalorder %s21, 1
      %p123 = scmp.ne.s32.totalorder %s118, %s120
      %p124 = scmp.eq.s32.totalorder %s21, 0
      %p125 = por %p123, %p124
      %p126 = scmp.ne.s32.totalorder %s118, %s120
      %p127 = scmp.eq.s32.totalorder %s26, 1
      %p128 = por %p126, %p127
      %p129 = scmp.ne.s32.totalorder %s120, %s121
      %p130 = scmp.eq.s32.totalorder %s26, 0
      %p131 = por %p129, %p130
      %p132 = scmp.ne.s32.totalorder %s120, %s121
      %p133 = scmp.eq.s32.totalorder %s27, 1
      %p134 = por %p132, %p133
      %p136 = scmp.ne.s32.totalorder %s121, %s135
      %p137 = scmp.eq.s32.totalorder %s27, 0
      %p138 = por %p136, %p137
      %s140 = sadd.s32 %s139, 1
      %p143 = scmp.eq.s32.totalorder %s21, 1
      %p144 = scmp.ne.s32.totalorder %s139, %s141
      %p145 = scmp.eq.s32.totalorder %s21, 0
      %p146 = por %p144, %p145
      %p147 = scmp.ne.s32.totalorder %s139, %s141
      %p148 = scmp.eq.s32.totalorder %s26, 1
      %p149 = por %p147, %p148
      %p150 = scmp.ne.s32.totalorder %s141, %s142
      %p151 = scmp.eq.s32.totalorder %s26, 0
      %p152 = por %p150, %p151
      %p153 = scmp.ne.s32.totalorder %s141, %s142
      %p154 = scmp.eq.s32.totalorder %s27, 1
      %p155 = por %p153, %p154
      %p157 = scmp.ne.s32.totalorder %s142, %s156
      %p158 = scmp.eq.s32.totalorder %s27, 0
      %p159 = por %p157, %p158
      %s160 = ssub.s32 %s21, %s28
      %p161 = scmp.eq.s32.totalorder %s160, 0
      %s163 = sadd.s32 %s162, 1
      %s164 = scalar_select %p161, %s162, %s163
      %p167 = pneg %p161
      %p168 = scmp.eq.s32.totalorder %s21, 1
      %p169 = por %p167, %p168
      %p170 = scmp.ne.s32.totalorder %s162, %s165
      %p171 = scmp.eq.s32.totalorder %s21, 0
      %p172 = por %p170, %p171
      %p173 = scmp.ne.s32.totalorder %s162, %s165
      %p174 = scmp.eq.s32.totalorder %s26, 1
      %p175 = por %p173, %p174
      %p176 = scmp.ne.s32.totalorder %s165, %s166
      %p177 = scmp.eq.s32.totalorder %s26, 0
      %p178 = por %p176, %p177
      %p179 = scmp.ne.s32.totalorder %s165, %s166
      %p180 = scmp.eq.s32.totalorder %s27, 1
      %p181 = por %p179, %p180
      %p183 = scmp.ne.s32.totalorder %s166, %s182
      %p184 = scmp.eq.s32.totalorder %s27, 0
      %p185 = por %p183, %p184
      %s186 = ssub.s32 %s21, %s28
      %p187 = scmp.eq.s32.totalorder %s186, 0
      %s189 = sadd.s32 %s188, 1
      %s190 = scalar_select %p187, %s188, %s189
      %p193 = pneg %p187
      %p194 = scmp.eq.s32.totalorder %s21, 1
      %p195 = por %p193, %p194
      %p196 = scmp.ne.s32.totalorder %s188, %s191
      %p197 = scmp.eq.s32.totalorder %s21, 0
      %p198 = por %p196, %p197
      %p199 = scmp.ne.s32.totalorder %s188, %s191
      %p200 = scmp.eq.s32.totalorder %s26, 1
      %p201 = por %p199, %p200
      %p202 = scmp.ne.s32.totalorder %s191, %s192
      %p203 = scmp.eq.s32.totalorder %s26, 0
      %p204 = por %p202, %p203
      %p205 = scmp.ne.s32.totalorder %s191, %s192
      %p206 = scmp.eq.s32.totalorder %s27, 1
      %p207 = por %p205, %p206
      %p209 = scmp.ne.s32.totalorder %s192, %s208
      %p210 = scmp.eq.s32.totalorder %s27, 0
      %p211 = por %p209, %p210
      %s212 = ssub.s32 %s21, %s28
      %p213 = scmp.eq.s32.totalorder %s212, 0
      %s215 = sadd.s32 %s214, 1
      %s216 = scalar_select %p213, %s214, %s215
      %p219 = pneg %p213
      %p220 = scmp.eq.s32.totalorder %s21, 1
      %p221 = por %p219, %p220
      %p222 = scmp.ne.s32.totalorder %s214, %s217
      %p223 = scmp.eq.s32.totalorder %s21, 0
      %p224 = por %p222, %p223
      %p225 = scmp.ne.s32.totalorder %s214, %s217
      %p226 = scmp.eq.s32.totalorder %s26, 1
      %p227 = por %p225, %p226
      %p228 = scmp.ne.s32.totalorder %s217, %s218
      %p229 = scmp.eq.s32.totalorder %s26, 0
      %p230 = por %p228, %p229
      %p231 = scmp.ne.s32.totalorder %s217, %s218
      %p232 = scmp.eq.s32.totalorder %s27, 1
      %p233 = por %p231, %p232
      %p235 = scmp.ne.s32.totalorder %s218, %s234
      %p236 = scmp.eq.s32.totalorder %s27, 0
      %p237 = por %p235, %p236
      %p238 = scmp.le.s32.totalorder 1, %s21
      %p239 = scmp.lt.s32.totalorder %s21, 3
      %p240 = pnand %p238, %p239
      %p241 = pneg %p240
      // Predicated region
      $region9: #{tpu_custom_call.1} parent=5 // pred_check
        _
      $region10: #{tpu_custom_call.1} parent=5 // pred_check_branch
        %243 = sbr.rel (%p240) target = $region12
      $region11: #{tpu_custom_call.1} parent=5 // pred_region
        %s244 = ssub.s32 %s21, 1
        // Predicated region
        $region13: #{tpu_custom_call.1} parent=11 // pred_check
          %p245 = pneg %p68
        $region14: #{tpu_custom_call.1} parent=11 // pred_check_branch
          %247 = sbr.rel (%p245) target = $region16
        $region15: #{tpu_custom_call.1} parent=11 // pred_region
          _
        $region16: #{tpu_custom_call.1} parent=11 // pred_fallthru
          _
        // Predicated region
        $region17: #{tpu_custom_call.1} parent=11 // pred_check
          %p248 = pneg %p89
        $region18: #{tpu_custom_call.1} parent=11 // pred_check_branch
          %250 = sbr.rel (%p248) target = $region20
        $region19: #{tpu_custom_call.1} parent=11 // pred_region
          _
        $region20: #{tpu_custom_call.1} parent=11 // pred_fallthru
          _
        // Predicated region
        $region21: #{tpu_custom_call.1} parent=11 // pred_check
          %p251 = pneg %p110
        $region22: #{tpu_custom_call.1} parent=11 // pred_check_branch
          %253 = sbr.rel (%p251) target = $region24
        $region23: #{tpu_custom_call.1} parent=11 // pred_region
          _
        $region24: #{tpu_custom_call.1} parent=11 // pred_fallthru
          _
        // Predicated region
        $region25: #{tpu_custom_call.1} parent=11 // pred_check
          %p254 = pneg %p131
        $region26: #{tpu_custom_call.1} parent=11 // pred_check_branch
          %256 = sbr.rel (%p254) target = $region28
        $region27: #{tpu_custom_call.1} parent=11 // pred_region
          _
        $region28: #{tpu_custom_call.1} parent=11 // pred_fallthru
          _
        // Predicated region
        $region29: #{tpu_custom_call.1} parent=11 // pred_check
          %p257 = pneg %p152
        $region30: #{tpu_custom_call.1} parent=11 // pred_check_branch
          %259 = sbr.rel (%p257) target = $region32
        $region31: #{tpu_custom_call.1} parent=11 // pred_region
          _
        $region32: #{tpu_custom_call.1} parent=11 // pred_fallthru
          _
      $region12: #{tpu_custom_call.1} parent=5 // pred_fallthru
        _
      %p260 = scmp.lt.s32.totalorder %s21, 2
      // Predicated region
      $region33: #{tpu_custom_call.1} parent=5 // pred_check
        %p261 = pneg %p260
      $region34: #{tpu_custom_call.1} parent=5 // pred_check_branch
        %263 = sbr.rel (%p261) target = $region36
      $region35: #{tpu_custom_call.1} parent=5 // pred_region
        // Predicated region
        $region37: #{tpu_custom_call.1} parent=35 // pred_check
          %p264 = pneg %p41
        $region38: #{tpu_custom_call.1} parent=35 // pred_check_branch
          %266 = sbr.rel (%p264) target = $region40
        $region39: #{tpu_custom_call.1} parent=35 // pred_region
          %p267 = scmp.lt.s32.totalorder %s21, 1
          %s268 = scalar_select %p267, %s21, 1
          %s269 = smul.addr %s268, 3
          %s270 = smul.addr %s269, 4
          %s271 = scalar_lea.vmem %s0, %s270
        $region40: #{tpu_custom_call.1} parent=35 // pred_fallthru
          _
      $region36: #{tpu_custom_call.1} parent=5 // pred_fallthru
        _
      %p272 = scmp.le.s32.totalorder 1, %s21
      %p273 = scmp.lt.s32.totalorder %s21, 3
      %p274 = pnand %p272, %p273
      %p275 = pneg %p274
      // Predicated region
      $region41: #{tpu_custom_call.1} parent=5 // pred_check
        _
      $region42: #{tpu_custom_call.1} parent=5 // pred_check_branch
        %277 = sbr.rel (%p274) target = $region44
      $region43: #{tpu_custom_call.1} parent=5 // pred_region
        %s278 = ssub.s32 %s21, 1
        %p279 = scmp.lt.s32.totalorder %s26, 1
        %s280 = scalar_select %p279, %s26, 1
        %s281 = smul.addr %s280, 3
        %s282 = smul.addr %s281, 4
        %s283 = scalar_lea.vmem %s0, %s282
        %p284 = pneg %p47
        %p285 = pneg %p44
        %p286 = pneg %p68
        %p287 = pneg %p65
        %p288 = pneg %p89
        %p289 = pneg %p86
        %p290 = pneg %p110
        %p291 = pneg %p107
        %p292 = pneg %p131
        %p293 = pneg %p128
        %p294 = pneg %p152
        %p295 = pneg %p149
        %p296 = pneg %p178
        %p297 = pneg %p175
        %s298 = sand.u32 %s165, 1
        %s299 = scalar_lea.sflag [#allocation3], %s298
        %s300 = sand.u32 %s165, 1
        %s301 = smul.addr %s300, 24
        %s302 = scalar_lea.vmem [#allocation2], %s301
        %p303 = pneg %p204
        %p304 = pneg %p201
        %s305 = sand.u32 %s26, 1
        %s306 = scalar_lea.sflag [#allocation5], %s305
        %s307 = sand.u32 %s191, 1
        %s308 = scalar_lea.vmem [#allocation4], %s307
        %p309 = pneg %p230
        %p310 = pneg %p227
        %s311 = sand.u32 %s26, 1
        %s312 = scalar_lea.sflag [#allocation5], %s311
        %s313 = sand.u32 %s217, 1
        %s314 = scalar_lea.vmem [#allocation6], %s313
        %p315 = scmp.lt.s32.totalorder %s26, 1
        %s316 = scalar_select %p315, %s26, 1
        %s317 = smul.addr %s316, 3
        %s318 = smul.addr %s317, 4
        %s319 = scalar_lea.vmem %s0, %s318
        %v320 = vld [vmem:[%s1] sm:$0xff]
        %v321 = vld [vmem:[%s3] sm:$0x1]
        %vm322 = vcmask 64512
        %v324 = vsel %vm322, %v321, 0
        %326 = vmatprep.subr.mxu0 0.0
        %327 = vmatpush1.msra.mxu0 %v320
        %328 = vmatprep.subr.mxu0 0.0
        %329 = vmatpush1.msra.mxu0 0.0
        %330 = vmatprep.subr.mxu0 0.0
        %331 = vmatpush1.msra.mxu0 0.0
        %332 = vmatprep.subr.mxu0 0.0
        %333 = vmatpush1.msra.mxu0 0.0
        %334 = vmatprep.subr.mxu0 0.0
        %335 = vmatpush1.msra.mxu0 0.0
        %336 = vmatprep.subr.mxu0 0.0
        %337 = vmatpush1.msra.mxu0 0.0
        %338 = vmatprep.subr.mxu0 0.0
        %339 = vmatpush1.msra.mxu0 0.0
        %340 = vmatprep.subr.mxu0 0.0
        %341 = vmatpush1.msra.mxu0 0.0
        %342 = vmatprep.subr.mxu0 0.0
        %343 = vmatpush1.msra.mxu0 0.0
        %344 = vmatprep.subr.mxu0 0.0
        %345 = vmatpush1.msra.mxu0 0.0
        %346 = vmatprep.subr.mxu0 0.0
        %347 = vmatpush1.msra.mxu0 0.0
        %348 = vmatprep.subr.mxu0 0.0
        %349 = vmatpush1.msra.mxu0 0.0
        %350 = vmatprep.subr.mxu0 0.0
        %351 = vmatpush1.msra.mxu0 0.0
        %352 = vmatprep.subr.mxu0 0.0
        %353 = vmatpush1.msra.mxu0 0.0
        %354 = vmatprep.subr.mxu0 0.0
        %355 = vmatpush1.msra.mxu0 0.0
        %356 = vmatprep.subr.mxu0 0.0
        %357 = vmatpush1.msra.mxu0 0.0
        %358 = vmatprep.subr.mxu0 0.0
        %359 = vmatpush1.msra.mxu0 0.0
        %360 = vmatprep.subr.mxu0 0.0
        %361 = vmatpush1.msra.mxu0 0.0
        %362 = vmatprep.subr.mxu0 0.0
        %363 = vmatpush1.msra.mxu0 0.0
        %364 = vmatprep.subr.mxu0 0.0
        %365 = vmatpush1.msra.mxu0 0.0
        %366 = vmatprep.subr.mxu0 0.0
        %367 = vmatpush1.msra.mxu0 0.0
        %368 = vmatprep.subr.mxu0 0.0
        %369 = vmatpush1.msra.mxu0 0.0
        %370 = vmatprep.subr.mxu0 0.0
        %371 = vmatpush1.msra.mxu0 0.0
        %372 = vmatprep.subr.mxu0 0.0
        %373 = vmatpush1.msra.mxu0 0.0
        %374 = vmatprep.subr.mxu0 0.0
        %375 = vmatpush1.msra.mxu0 0.0
        %376 = vmatprep.subr.mxu0 0.0
        %377 = vmatpush1.msra.mxu0 0.0
        %378 = vmatprep.subr.mxu0 0.0
        %379 = vmatpush1.msra.mxu0 0.0
        %380 = vmatprep.subr.mxu0 0.0
        %381 = vmatpush1.msra.mxu0 0.0
        %382 = vmatprep.subr.mxu0 0.0
        %383 = vmatpush1.msra.mxu0 0.0
        %384 = vmatprep.subr.mxu0 0.0
        %385 = vmatpush1.msra.mxu0 0.0
        %386 = vmatprep.subr.mxu0 0.0
        %387 = vmatpush1.msra.mxu0 0.0
        %388 = vmatprep.subr.mxu0 0.0
        %389 = vmatpush1.msra.mxu0 0.0
        %390 = vmatprep.mubr.f32.mxu0 0.0
        %391 = vmatmul.mubr.f32.gmra.mrb[0].mxu0 %v324
        %v392 = vpop.f32.mrb[0].mxu0
        %v393 = vadd.f32 0.0, %v392
        %v394 = vpop.f32.mrb[0].mxu0
        %395 = vdwg.mxu0
        %v396 = vmul.f32 %v393, %v393
        %vm397 = vcmask 286720
        %v398 = vsel %vm397, %v396, 0.0
        %399 = vadd.xlane.f32.xlu0 %v398
        %v400 = vpop.xlane.xlu0 %399
        %v401 = vrot.slane %v400, 4
        %v402 = vadd.f32 %v400, %v401
        %v403 = vrot.slane %v402, 2
        %v404 = vadd.f32 %v402, %v403
        %v405 = vrot.slane %v404, 1
        %v406 = vadd.f32 %v404, %v405
        %s407 = vtos %v406
        %v408 = vstv %s407
        %v409 = vrsqrt.pop %v408
        %v410 = vmul.f32 %v408, %v409
        %vm411 = vcmp.eq.f32.partialorder %v408, inf
        %v412 = vsel %vm411, %v408, %v410
        %vm413 = vcmp.eq.f32.partialorder %v408, 0.0
        %v414 = vand.u32 %v408, 2147483648
        %v415 = vsel %vm413, %v414, %v412
        %s416 = vtos %v415
        %s417 = sadd.f32 %s416, 1e-12
        %v418 = vstv %s417
        %v419 = vrcp.pop %v418
        %v420 = vmul.f32 %v393, %v419
        %vm421 = vcmask 293888
        %v423 = vsel %vm421, %v420, 0
        %v426 = vsel %vm421, %v320, 0
        %428 = vmatprep.subr.mxu0 0.0
        %429 = vmatpush1.xpose.msra.mxu0 %v426
        %430 = vmatprep.subr.mxu0 0.0
        %431 = vmatpush1.xpose.msra.mxu0 0.0
        %432 = vmatprep.subr.mxu0 0.0
        %433 = vmatpush1.xpose.msra.mxu0 0.0
        %434 = vmatprep.subr.mxu0 0.0
        %435 = vmatpush1.xpose.msra.mxu0 0.0
        %436 = vmatprep.subr.mxu0 0.0
        %437 = vmatpush1.xpose.msra.mxu0 0.0
        %438 = vmatprep.subr.mxu0 0.0
        %439 = vmatpush1.xpose.msra.mxu0 0.0
        %440 = vmatprep.subr.mxu0 0.0
        %441 = vmatpush1.xpose.msra.mxu0 0.0
        %442 = vmatprep.subr.mxu0 0.0
        %443 = vmatpush1.xpose.msra.mxu0 0.0
        %444 = vmatprep.subr.mxu0 0.0
        %445 = vmatpush1.xpose.msra.mxu0 0.0
        %446 = vmatprep.subr.mxu0 0.0
        %447 = vmatpush1.xpose.msra.mxu0 0.0
        %448 = vmatprep.subr.mxu0 0.0
        %449 = vmatpush1.xpose.msra.mxu0 0.0
        %450 = vmatprep.subr.mxu0 0.0
        %451 = vmatpush1.xpose.msra.mxu0 0.0
        %452 = vmatprep.subr.mxu0 0.0
        %453 = vmatpush1.xpose.msra.mxu0 0.0
        %454 = vmatprep.subr.mxu0 0.0
        %455 = vmatpush1.xpose.msra.mxu0 0.0
        %456 = vmatprep.subr.mxu0 0.0
        %457 = vmatpush1.xpose.msra.mxu0 0.0
        %458 = vmatprep.subr.mxu0 0.0
        %459 = vmatpush1.xpose.msra.mxu0 0.0
        %460 = vmatprep.subr.mxu0 0.0
        %461 = vmatpush1.xpose.msra.mxu0 0.0
        %462 = vmatprep.subr.mxu0 0.0
        %463 = vmatpush1.xpose.msra.mxu0 0.0
        %464 = vmatprep.subr.mxu0 0.0
        %465 = vmatpush1.xpose.msra.mxu0 0.0
        %466 = vmatprep.subr.mxu0 0.0
        %467 = vmatpush1.xpose.msra.mxu0 0.0
        %468 = vmatprep.subr.mxu0 0.0
        %469 = vmatpush1.xpose.msra.mxu0 0.0
        %470 = vmatprep.subr.mxu0 0.0
        %471 = vmatpush1.xpose.msra.mxu0 0.0
        %472 = vmatprep.subr.mxu0 0.0
        %473 = vmatpush1.xpose.msra.mxu0 0.0
        %474 = vmatprep.subr.mxu0 0.0
        %475 = vmatpush1.xpose.msra.mxu0 0.0
        %476 = vmatprep.subr.mxu0 0.0
        %477 = vmatpush1.xpose.msra.mxu0 0.0
        %478 = vmatprep.subr.mxu0 0.0
        %479 = vmatpush1.xpose.msra.mxu0 0.0
        %480 = vmatprep.subr.mxu0 0.0
        %481 = vmatpush1.xpose.msra.mxu0 0.0
        %482 = vmatprep.subr.mxu0 0.0
        %483 = vmatpush1.xpose.msra.mxu0 0.0
        %484 = vmatprep.subr.mxu0 0.0
        %485 = vmatpush1.xpose.msra.mxu0 0.0
        %486 = vmatprep.subr.mxu0 0.0
        %487 = vmatpush1.xpose.msra.mxu0 0.0
        %488 = vmatprep.subr.mxu0 0.0
        %489 = vmatpush1.xpose.msra.mxu0 0.0
        %490 = vmatprep.subr.mxu0 0.0
        %491 = vmatpush1.xpose.msra.mxu0 0.0
        %492 = vmatprep.mubr.f32.mxu0 0.0
        %493 = vmatmul.mubr.f32.gmra.mrb[0].mxu0 %v423
        %v494 = vpop.f32.mrb[0].mxu0
        %v495 = vadd.f32 0.0, %v494
        %v496 = vpop.f32.mrb[0].mxu0
        %497 = vdwg.mxu0
        %v498 = vmul.f32 %v495, %v495
        %vm499 = vcmask 57344
        %v500 = vsel %vm499, %v498, 0.0
        %501 = vadd.xlane.f32.xlu0 %v500
        %v502 = vpop.xlane.xlu0 %501
        %v503 = vrot.slane %v502, 4
        %v504 = vadd.f32 %v502, %v503
        %v505 = vrot.slane %v504, 2
        %v506 = vadd.f32 %v504, %v505
        %v507 = vrot.slane %v506, 1
        %v508 = vadd.f32 %v506, %v507
        %s509 = vtos %v508
        %v510 = vstv %s509
        %v511 = vrsqrt.pop %v510
        %v512 = vmul.f32 %v510, %v511
        %vm513 = vcmp.eq.f32.partialorder %v510, inf
        %v514 = vsel %vm513, %v510, %v512
        %vm515 = vcmp.eq.f32.partialorder %v510, 0.0
        %v516 = vand.u32 %v510, 2147483648
        %v517 = vsel %vm515, %v516, %v514
        %s518 = vtos %v517
        %s519 = sadd.f32 %s518, 1e-12
        %v520 = vstv %s519
        %v521 = vrcp.pop %v520
        %v522 = vmul.f32 %v495, %v521
        %v523 = vmul.f32 %v522, %v495
        %v524 = vsel %vm499, %v523, 0.0
        %525 = vadd.xlane.f32.xlu0 %v524
        %v526 = vpop.xlane.xlu0 %525
        %v527 = vrot.slane %v526, 4
        %v528 = vadd.f32 %v526, %v527
        %v529 = vrot.slane %v528, 2
        %v530 = vadd.f32 %v528, %v529
        %v531 = vrot.slane %v530, 1
        %v532 = vadd.f32 %v530, %v531
        %s533 = vtos %v532
        %v534 = vstv %s533
        %v535 = vrcp.pop %v534
        %s536 = vtos %v535
        %537 = vst.msk [vmem:[%s308] sm:$0x1] %vm499, %v522
        %538 = vst.msk [vmem:[%s314] sm:$0x1] %vm397, %v420
        %v539 = vld [vmem:[%s319] sm:$0xff]
        %v540 = vld [vmem:[%s319 + $0x8] sm:$0xf]
        %v541 = vld [vmem:[%s2] sm:$0xff]
        %s542 = scalar_lea.vmem %s2, 8
        %v543 = vld [vmem:[%s542] sm:$0xff]
        %v546 = vcombine.high %v539, %v539
        %547 = vrot.lane.b32.xlu0 %v539, 127
        %v548 = vpop.permute.xlu0 %547
        %549 = vrot.lane.b32.xlu0 %v546, 127
        %v550 = vpop.permute.xlu0 %549
        %551 = vrot.lane.b32.xlu0 %v540, 127
        %v552 = vpop.permute.xlu0 %551
        %vm553 = vcmask 1039360
        %v554 = vsel %vm553, %v548, %v550
        %v555 = vsel %vm553, %v550, %v552
        %vm556 = vcmask 31744
        %v558 = vsel %vm556, %v543, 0
        %vm560 = vcmask 1043456
        %v561 = vsel %vm560, %v554, 0
        %v563 = vsel %vm560, %v555, 0
        %v565 = vsel %vm560, %v552, 0
        %567 = vmatprep.subr.mxu0 %v563
        %568 = vmatpush1.msra.mxu0 %v561
        %569 = vmatprep.subr.mxu0 0.0
        %570 = vmatpush1.msra.mxu0 0.0
        %571 = vmatprep.subr.mxu0 0.0
        %572 = vmatpush1.msra.mxu0 0.0
        %573 = vmatprep.subr.mxu0 0.0
        %574 = vmatpush1.msra.mxu0 0.0
        %575 = vmatprep.subr.mxu0 0.0
        %576 = vmatpush1.msra.mxu0 0.0
        %577 = vmatprep.subr.mxu0 0.0
        %578 = vmatpush1.msra.mxu0 0.0
        %579 = vmatprep.subr.mxu0 0.0
        %580 = vmatpush1.msra.mxu0 0.0
        %581 = vmatprep.subr.mxu0 0.0
        %582 = vmatpush1.msra.mxu0 0.0
        %583 = vmatprep.subr.mxu0 0.0
        %584 = vmatpush1.msra.mxu0 0.0
        %585 = vmatprep.subr.mxu0 0.0
        %586 = vmatpush1.msra.mxu0 0.0
        %587 = vmatprep.subr.mxu0 0.0
        %588 = vmatpush1.msra.mxu0 0.0
        %589 = vmatprep.subr.mxu0 0.0
        %590 = vmatpush1.msra.mxu0 0.0
        %591 = vmatprep.subr.mxu0 0.0
        %592 = vmatpush1.msra.mxu0 0.0
        %593 = vmatprep.subr.mxu0 0.0
        %594 = vmatpush1.msra.mxu0 0.0
        %595 = vmatprep.subr.mxu0 0.0
        %596 = vmatpush1.msra.mxu0 0.0
        %597 = vmatprep.subr.mxu0 0.0
        %598 = vmatpush1.msra.mxu0 0.0
        %599 = vmatprep.subr.mxu0 0.0
        %600 = vmatpush1.msra.mxu0 0.0
        %601 = vmatprep.subr.mxu0 0.0
        %602 = vmatpush1.msra.mxu0 0.0
        %603 = vmatprep.subr.mxu0 0.0
        %604 = vmatpush1.msra.mxu0 0.0
        %605 = vmatprep.subr.mxu0 0.0
        %606 = vmatpush1.msra.mxu0 0.0
        %607 = vmatprep.subr.mxu0 0.0
        %608 = vmatpush1.msra.mxu0 0.0
        %609 = vmatprep.subr.mxu0 0.0
        %610 = vmatpush1.msra.mxu0 0.0
        %611 = vmatprep.subr.mxu0 0.0
        %612 = vmatpush1.msra.mxu0 0.0
        %613 = vmatprep.subr.mxu0 0.0
        %614 = vmatpush1.msra.mxu0 0.0
        %615 = vmatprep.subr.mxu0 0.0
        %616 = vmatpush1.msra.mxu0 0.0
        %617 = vmatprep.subr.mxu0 0.0
        %618 = vmatpush1.msra.mxu0 0.0
        %619 = vmatprep.subr.mxu0 0.0
        %620 = vmatpush1.msra.mxu0 0.0
        %621 = vmatprep.subr.mxu0 0.0
        %622 = vmatpush1.msra.mxu0 0.0
        %623 = vmatprep.subr.mxu0 0.0
        %624 = vmatpush1.msra.mxu0 0.0
        %625 = vmatprep.subr.mxu0 0.0
        %626 = vmatpush1.msra.mxu0 0.0
        %627 = vmatprep.subr.mxu0 0.0
        %628 = vmatpush1.msra.mxu0 0.0
        %629 = vmatprep.subr.mxu0 0.0
        %630 = vmatpush1.msra.mxu0 0.0
        %631 = vmatprep.mubr.f32.mxu0 0.0
        %632 = vmatmul.mubr.f32.gmra.mrb[0].mxu0 %v558
        %v633 = vpop.f32.mrb[0].mxu0
        %v634 = vadd.f32 0.0, %v633
        %v635 = vpop.f32.mrb[0].mxu0
        %v636 = vadd.f32 0.0, %v635
        %637 = vdwg.mxu0
        %638 = vmatprep.subr.mxu0 0.0
        %639 = vmatpush1.msra.mxu0 %v565
        %640 = vmatprep.subr.mxu0 0.0
        %641 = vmatpush1.msra.mxu0 0.0
        %642 = vmatprep.subr.mxu0 0.0
        %643 = vmatpush1.msra.mxu0 0.0
        %644 = vmatprep.subr.mxu0 0.0
        %645 = vmatpush1.msra.mxu0 0.0
        %646 = vmatprep.subr.mxu0 0.0
        %647 = vmatpush1.msra.mxu0 0.0
        %648 = vmatprep.subr.mxu0 0.0
        %649 = vmatpush1.msra.mxu0 0.0
        %650 = vmatprep.subr.mxu0 0.0
        %651 = vmatpush1.msra.mxu0 0.0
        %652 = vmatprep.subr.mxu0 0.0
        %653 = vmatpush1.msra.mxu0 0.0
        %654 = vmatprep.subr.mxu0 0.0
        %655 = vmatpush1.msra.mxu0 0.0
        %656 = vmatprep.subr.mxu0 0.0
        %657 = vmatpush1.msra.mxu0 0.0
        %658 = vmatprep.subr.mxu0 0.0
        %659 = vmatpush1.msra.mxu0 0.0
        %660 = vmatprep.subr.mxu0 0.0
        %661 = vmatpush1.msra.mxu0 0.0
        %662 = vmatprep.subr.mxu0 0.0
        %663 = vmatpush1.msra.mxu0 0.0
        %664 = vmatprep.subr.mxu0 0.0
        %665 = vmatpush1.msra.mxu0 0.0
        %666 = vmatprep.subr.mxu0 0.0
        %667 = vmatpush1.msra.mxu0 0.0
        %668 = vmatprep.subr.mxu0 0.0
        %669 = vmatpush1.msra.mxu0 0.0
        %670 = vmatprep.subr.mxu0 0.0
        %671 = vmatpush1.msra.mxu0 0.0
        %672 = vmatprep.subr.mxu0 0.0
        %673 = vmatpush1.msra.mxu0 0.0
        %674 = vmatprep.subr.mxu0 0.0
        %675 = vmatpush1.msra.mxu0 0.0
        %676 = vmatprep.subr.mxu0 0.0
        %677 = vmatpush1.msra.mxu0 0.0
        %678 = vmatprep.subr.mxu0 0.0
        %679 = vmatpush1.msra.mxu0 0.0
        %680 = vmatprep.subr.mxu0 0.0
        %681 = vmatpush1.msra.mxu0 0.0
        %682 = vmatprep.subr.mxu0 0.0
        %683 = vmatpush1.msra.mxu0 0.0
        %684 = vmatprep.subr.mxu0 0.0
        %685 = vmatpush1.msra.mxu0 0.0
        %686 = vmatprep.subr.mxu0 0.0
        %687 = vmatpush1.msra.mxu0 0.0
        %688 = vmatprep.subr.mxu0 0.0
        %689 = vmatpush1.msra.mxu0 0.0
        %690 = vmatprep.subr.mxu0 0.0
        %691 = vmatpush1.msra.mxu0 0.0
        %692 = vmatprep.subr.mxu0 0.0
        %693 = vmatpush1.msra.mxu0 0.0
        %694 = vmatprep.subr.mxu0 0.0
        %695 = vmatpush1.msra.mxu0 0.0
        %696 = vmatprep.subr.mxu0 0.0
        %697 = vmatpush1.msra.mxu0 0.0
        %698 = vmatprep.subr.mxu0 0.0
        %699 = vmatpush1.msra.mxu0 0.0
        %700 = vmatprep.subr.mxu0 0.0
        %701 = vmatpush1.msra.mxu0 0.0
        %702 = vmatprep.mubr.f32.mxu0 0.0
        %703 = vmatmul.mubr.f32.gmra.mrb[0].mxu0 %v558
        %v704 = vpop.f32.mrb[0].mxu0
        %v705 = vadd.f32 0.0, %v704
        %v706 = vpop.f32.mrb[0].mxu0
        %707 = vdwg.mxu0
        %v709 = vsel %vm556, %v541, 0
        %v711 = vsel %vm560, %v539, 0
        %v713 = vsel %vm560, %v546, 0
        %v715 = vsel %vm560, %v540, 0
        %717 = vmatprep.subr.mxu0 %v713
        %718 = vmatpush1.msra.mxu0 %v711
        %719 = vmatprep.subr.mxu0 0.0
        %720 = vmatpush1.msra.mxu0 0.0
        %721 = vmatprep.subr.mxu0 0.0
        %722 = vmatpush1.msra.mxu0 0.0
        %723 = vmatprep.subr.mxu0 0.0
        %724 = vmatpush1.msra.mxu0 0.0
        %725 = vmatprep.subr.mxu0 0.0
        %726 = vmatpush1.msra.mxu0 0.0
        %727 = vmatprep.subr.mxu0 0.0
        %728 = vmatpush1.msra.mxu0 0.0
        %729 = vmatprep.subr.mxu0 0.0
        %730 = vmatpush1.msra.mxu0 0.0
        %731 = vmatprep.subr.mxu0 0.0
        %732 = vmatpush1.msra.mxu0 0.0
        %733 = vmatprep.subr.mxu0 0.0
        %734 = vmatpush1.msra.mxu0 0.0
        %735 = vmatprep.subr.mxu0 0.0
        %736 = vmatpush1.msra.mxu0 0.0
        %737 = vmatprep.subr.mxu0 0.0
        %738 = vmatpush1.msra.mxu0 0.0
        %739 = vmatprep.subr.mxu0 0.0
        %740 = vmatpush1.msra.mxu0 0.0
        %741 = vmatprep.subr.mxu0 0.0
        %742 = vmatpush1.msra.mxu0 0.0
        %743 = vmatprep.subr.mxu0 0.0
        %744 = vmatpush1.msra.mxu0 0.0
        %745 = vmatprep.subr.mxu0 0.0
        %746 = vmatpush1.msra.mxu0 0.0
        %747 = vmatprep.subr.mxu0 0.0
        %748 = vmatpush1.msra.mxu0 0.0
        %749 = vmatprep.subr.mxu0 0.0
        %750 = vmatpush1.msra.mxu0 0.0
        %751 = vmatprep.subr.mxu0 0.0
        %752 = vmatpush1.msra.mxu0 0.0
        %753 = vmatprep.subr.mxu0 0.0
        %754 = vmatpush1.msra.mxu0 0.0
        %755 = vmatprep.subr.mxu0 0.0
        %756 = vmatpush1.msra.mxu0 0.0
        %757 = vmatprep.subr.mxu0 0.0
        %758 = vmatpush1.msra.mxu0 0.0
        %759 = vmatprep.subr.mxu0 0.0
        %760 = vmatpush1.msra.mxu0 0.0
        %761 = vmatprep.subr.mxu0 0.0
        %762 = vmatpush1.msra.mxu0 0.0
        %763 = vmatprep.subr.mxu0 0.0
        %764 = vmatpush1.msra.mxu0 0.0
        %765 = vmatprep.subr.mxu0 0.0
        %766 = vmatpush1.msra.mxu0 0.0
        %767 = vmatprep.subr.mxu0 0.0
        %768 = vmatpush1.msra.mxu0 0.0
        %769 = vmatprep.subr.mxu0 0.0
        %770 = vmatpush1.msra.mxu0 0.0
        %771 = vmatprep.subr.mxu0 0.0
        %772 = vmatpush1.msra.mxu0 0.0
        %773 = vmatprep.subr.mxu0 0.0
        %774 = vmatpush1.msra.mxu0 0.0
        %775 = vmatprep.subr.mxu0 0.0
        %776 = vmatpush1.msra.mxu0 0.0
        %777 = vmatprep.subr.mxu0 0.0
        %778 = vmatpush1.msra.mxu0 0.0
        %779 = vmatprep.subr.mxu0 0.0
        %780 = vmatpush1.msra.mxu0 0.0
        %781 = vmatprep.mubr.f32.mxu0 0.0
        %782 = vmatmul.mubr.f32.gmra.mrb[0].mxu0 %v709
        %v783 = vpop.f32.mrb[0].mxu0
        %v784 = vadd.f32 %v634, %v783
        %v785 = vpop.f32.mrb[0].mxu0
        %v786 = vadd.f32 %v636, %v785
        %787 = vdwg.mxu0
        %788 = vmatprep.subr.mxu0 0.0
        %789 = vmatpush1.msra.mxu0 %v715
        %790 = vmatprep.subr.mxu0 0.0
        %791 = vmatpush1.msra.mxu0 0.0
        %792 = vmatprep.subr.mxu0 0.0
        %793 = vmatpush1.msra.mxu0 0.0
        %794 = vmatprep.subr.mxu0 0.0
        %795 = vmatpush1.msra.mxu0 0.0
        %796 = vmatprep.subr.mxu0 0.0
        %797 = vmatpush1.msra.mxu0 0.0
        %798 = vmatprep.subr.mxu0 0.0
        %799 = vmatpush1.msra.mxu0 0.0
        %800 = vmatprep.subr.mxu0 0.0
        %801 = vmatpush1.msra.mxu0 0.0
        %802 = vmatprep.subr.mxu0 0.0
        %803 = vmatpush1.msra.mxu0 0.0
        %804 = vmatprep.subr.mxu0 0.0
        %805 = vmatpush1.msra.mxu0 0.0
        %806 = vmatprep.subr.mxu0 0.0
        %807 = vmatpush1.msra.mxu0 0.0
        %808 = vmatprep.subr.mxu0 0.0
        %809 = vmatpush1.msra.mxu0 0.0
        %810 = vmatprep.subr.mxu0 0.0
        %811 = vmatpush1.msra.mxu0 0.0
        %812 = vmatprep.subr.mxu0 0.0
        %813 = vmatpush1.msra.mxu0 0.0
        %814 = vmatprep.subr.mxu0 0.0
        %815 = vmatpush1.msra.mxu0 0.0
        %816 = vmatprep.subr.mxu0 0.0
        %817 = vmatpush1.msra.mxu0 0.0
        %818 = vmatprep.subr.mxu0 0.0
        %819 = vmatpush1.msra.mxu0 0.0
        %820 = vmatprep.subr.mxu0 0.0
        %821 = vmatpush1.msra.mxu0 0.0
        %822 = vmatprep.subr.mxu0 0.0
        %823 = vmatpush1.msra.mxu0 0.0
        %824 = vmatprep.subr.mxu0 0.0
        %825 = vmatpush1.msra.mxu0 0.0
        %826 = vmatprep.subr.mxu0 0.0
        %827 = vmatpush1.msra.mxu0 0.0
        %828 = vmatprep.subr.mxu0 0.0
        %829 = vmatpush1.msra.mxu0 0.0
        %830 = vmatprep.subr.mxu0 0.0
        %831 = vmatpush1.msra.mxu0 0.0
        %832 = vmatprep.subr.mxu0 0.0
        %833 = vmatpush1.msra.mxu0 0.0
        %834 = vmatprep.subr.mxu0 0.0
        %835 = vmatpush1.msra.mxu0 0.0
        %836 = vmatprep.subr.mxu0 0.0
        %837 = vmatpush1.msra.mxu0 0.0
        %838 = vmatprep.subr.mxu0 0.0
        %839 = vmatpush1.msra.mxu0 0.0
        %840 = vmatprep.subr.mxu0 0.0
        %841 = vmatpush1.msra.mxu0 0.0
        %842 = vmatprep.subr.mxu0 0.0
        %843 = vmatpush1.msra.mxu0 0.0
        %844 = vmatprep.subr.mxu0 0.0
        %845 = vmatpush1.msra.mxu0 0.0
        %846 = vmatprep.subr.mxu0 0.0
        %847 = vmatpush1.msra.mxu0 0.0
        %848 = vmatprep.subr.mxu0 0.0
        %849 = vmatpush1.msra.mxu0 0.0
        %850 = vmatprep.subr.mxu0 0.0
        %851 = vmatpush1.msra.mxu0 0.0
        %852 = vmatprep.mubr.f32.mxu0 0.0
        %853 = vmatmul.mubr.f32.gmra.mrb[0].mxu0 %v709
        %v854 = vpop.f32.mrb[0].mxu0
        %v855 = vadd.f32 %v705, %v854
        %v856 = vpop.f32.mrb[0].mxu0
        %857 = vdwg.mxu0
        %s858 = scalar_lea.vmem %s2, 16
        %v859 = vld [vmem:[%s858] sm:$0xff]
        %860 = vrot.lane.b32.xlu0 %v539, 126
        %v861 = vpop.permute.xlu0 %860
        %862 = vrot.lane.b32.xlu0 %v546, 126
        %v863 = vpop.permute.xlu0 %862
        %864 = vrot.lane.b32.xlu0 %v540, 126
        %v865 = vpop.permute.xlu0 %864
        %vm866 = vcmask 1031168
        %v867 = vsel %vm866, %v861, %v863
        %v868 = vsel %vm866, %v863, %v865
        %v870 = vsel %vm556, %v859, 0
        %v872 = vsel %vm560, %v867, 0
        %v874 = vsel %vm560, %v868, 0
        %v876 = vsel %vm560, %v865, 0
        %878 = vmatprep.subr.mxu0 %v874
        %879 = vmatpush1.msra.mxu0 %v872
        %880 = vmatprep.subr.mxu0 0.0
        %881 = vmatpush1.msra.mxu0 0.0
        %882 = vmatprep.subr.mxu0 0.0
        %883 = vmatpush1.msra.mxu0 0.0
        %884 = vmatprep.subr.mxu0 0.0
        %885 = vmatpush1.msra.mxu0 0.0
        %886 = vmatprep.subr.mxu0 0.0
        %887 = vmatpush1.msra.mxu0 0.0
        %888 = vmatprep.subr.mxu0 0.0
        %889 = vmatpush1.msra.mxu0 0.0
        %890 = vmatprep.subr.mxu0 0.0
        %891 = vmatpush1.msra.mxu0 0.0
        %892 = vmatprep.subr.mxu0 0.0
        %893 = vmatpush1.msra.mxu0 0.0
        %894 = vmatprep.subr.mxu0 0.0
        %895 = vmatpush1.msra.mxu0 0.0
        %896 = vmatprep.subr.mxu0 0.0
        %897 = vmatpush1.msra.mxu0 0.0
        %898 = vmatprep.subr.mxu0 0.0
        %899 = vmatpush1.msra.mxu0 0.0
        %900 = vmatprep.subr.mxu0 0.0
        %901 = vmatpush1.msra.mxu0 0.0
        %902 = vmatprep.subr.mxu0 0.0
        %903 = vmatpush1.msra.mxu0 0.0
        %904 = vmatprep.subr.mxu0 0.0
        %905 = vmatpush1.msra.mxu0 0.0
        %906 = vmatprep.subr.mxu0 0.0
        %907 = vmatpush1.msra.mxu0 0.0
        %908 = vmatprep.subr.mxu0 0.0
        %909 = vmatpush1.msra.mxu0 0.0
        %910 = vmatprep.subr.mxu0 0.0
        %911 = vmatpush1.msra.mxu0 0.0
        %912 = vmatprep.subr.mxu0 0.0
        %913 = vmatpush1.msra.mxu0 0.0
        %914 = vmatprep.subr.mxu0 0.0
        %915 = vmatpush1.msra.mxu0 0.0
        %916 = vmatprep.subr.mxu0 0.0
        %917 = vmatpush1.msra.mxu0 0.0
        %918 = vmatprep.subr.mxu0 0.0
        %919 = vmatpush1.msra.mxu0 0.0
        %920 = vmatprep.subr.mxu0 0.0
        %921 = vmatpush1.msra.mxu0 0.0
        %922 = vmatprep.subr.mxu0 0.0
        %923 = vmatpush1.msra.mxu0 0.0
        %924 = vmatprep.subr.mxu0 0.0
        %925 = vmatpush1.msra.mxu0 0.0
        %926 = vmatprep.subr.mxu0 0.0
        %927 = vmatpush1.msra.mxu0 0.0
        %928 = vmatprep.subr.mxu0 0.0
        %929 = vmatpush1.msra.mxu0 0.0
        %930 = vmatprep.subr.mxu0 0.0
        %931 = vmatpush1.msra.mxu0 0.0
        %932 = vmatprep.subr.mxu0 0.0
        %933 = vmatpush1.msra.mxu0 0.0
        %934 = vmatprep.subr.mxu0 0.0
        %935 = vmatpush1.msra.mxu0 0.0
        %936 = vmatprep.subr.mxu0 0.0
        %937 = vmatpush1.msra.mxu0 0.0
        %938 = vmatprep.subr.mxu0 0.0
        %939 = vmatpush1.msra.mxu0 0.0
        %940 = vmatprep.subr.mxu0 0.0
        %941 = vmatpush1.msra.mxu0 0.0
        %942 = vmatprep.mubr.f32.mxu0 0.0
        %943 = vmatmul.mubr.f32.gmra.mrb[0].mxu0 %v870
        %v944 = vpop.f32.mrb[0].mxu0
        %v945 = vadd.f32 0.0, %v944
        %v946 = vpop.f32.mrb[0].mxu0
        %v947 = vadd.f32 0.0, %v946
        %948 = vdwg.mxu0
        %949 = vmatprep.subr.mxu0 0.0
        %950 = vmatpush1.msra.mxu0 %v876
        %951 = vmatprep.subr.mxu0 0.0
        %952 = vmatpush1.msra.mxu0 0.0
        %953 = vmatprep.subr.mxu0 0.0
        %954 = vmatpush1.msra.mxu0 0.0
        %955 = vmatprep.subr.mxu0 0.0
        %956 = vmatpush1.msra.mxu0 0.0
        %957 = vmatprep.subr.mxu0 0.0
        %958 = vmatpush1.msra.mxu0 0.0
        %959 = vmatprep.subr.mxu0 0.0
        %960 = vmatpush1.msra.mxu0 0.0
        %961 = vmatprep.subr.mxu0 0.0
        %962 = vmatpush1.msra.mxu0 0.0
        %963 = vmatprep.subr.mxu0 0.0
        %964 = vmatpush1.msra.mxu0 0.0
        %965 = vmatprep.subr.mxu0 0.0
        %966 = vmatpush1.msra.mxu0 0.0
        %967 = vmatprep.subr.mxu0 0.0
        %968 = vmatpush1.msra.mxu0 0.0
        %969 = vmatprep.subr.mxu0 0.0
        %970 = vmatpush1.msra.mxu0 0.0
        %971 = vmatprep.subr.mxu0 0.0
        %972 = vmatpush1.msra.mxu0 0.0
        %973 = vmatprep.subr.mxu0 0.0
        %974 = vmatpush1.msra.mxu0 0.0
        %975 = vmatprep.subr.mxu0 0.0
        %976 = vmatpush1.msra.mxu0 0.0
        %977 = vmatprep.subr.mxu0 0.0
        %978 = vmatpush1.msra.mxu0 0.0
        %979 = vmatprep.subr.mxu0 0.0
        %980 = vmatpush1.msra.mxu0 0.0
        %981 = vmatprep.subr.mxu0 0.0
        %982 = vmatpush1.msra.mxu0 0.0
        %983 = vmatprep.subr.mxu0 0.0
        %984 = vmatpush1.msra.mxu0 0.0
        %985 = vmatprep.subr.mxu0 0.0
        %986 = vmatpush1.msra.mxu0 0.0
        %987 = vmatprep.subr.mxu0 0.0
        %988 = vmatpush1.msra.mxu0 0.0
        %989 = vmatprep.subr.mxu0 0.0
        %990 = vmatpush1.msra.mxu0 0.0
        %991 = vmatprep.subr.mxu0 0.0
        %992 = vmatpush1.msra.mxu0 0.0
        %993 = vmatprep.subr.mxu0 0.0
        %994 = vmatpush1.msra.mxu0 0.0
        %995 = vmatprep.subr.mxu0 0.0
        %996 = vmatpush1.msra.mxu0 0.0
        %997 = vmatprep.subr.mxu0 0.0
        %998 = vmatpush1.msra.mxu0 0.0
        %999 = vmatprep.subr.mxu0 0.0
        %1000 = vmatpush1.msra.mxu0 0.0
        %1001 = vmatprep.subr.mxu0 0.0
        %1002 = vmatpush1.msra.mxu0 0.0
        %1003 = vmatprep.subr.mxu0 0.0
        %1004 = vmatpush1.msra.mxu0 0.0
        %1005 = vmatprep.subr.mxu0 0.0
        %1006 = vmatpush1.msra.mxu0 0.0
        %1007 = vmatprep.subr.mxu0 0.0
        %1008 = vmatpush1.msra.mxu0 0.0
        %1009 = vmatprep.subr.mxu0 0.0
        %1010 = vmatpush1.msra.mxu0 0.0
        %1011 = vmatprep.subr.mxu0 0.0
        %1012 = vmatpush1.msra.mxu0 0.0
        %1013 = vmatprep.mubr.f32.mxu0 0.0
        %1014 = vmatmul.mubr.f32.gmra.mrb[0].mxu0 %v870
        %v1015 = vpop.f32.mrb[0].mxu0
        %v1016 = vadd.f32 0.0, %v1015
        %v1017 = vpop.f32.mrb[0].mxu0
        %1018 = vdwg.mxu0
        %v1019 = vadd.f32 %v784, %v945
        %v1020 = vadd.f32 %v786, %v947
        %v1021 = vadd.f32 %v855, %v1016
        %s1022 = scalar_lea.vmem %s2, 24
        %v1023 = vld [vmem:[%s1022] sm:$0xff]
        %1024 = vrot.lane.b32.xlu0 %v539, 110
        %v1025 = vpop.permute.xlu0 %1024
        %1026 = vrot.lane.b32.xlu0 %v546, 110
        %v1027 = vpop.permute.xlu0 %1026
        %1028 = vrot.lane.b32.xlu0 %v540, 110
        %v1029 = vpop.permute.xlu0 %1028
        %vm1030 = vcmask 900096
        %v1031 = vsel %vm1030, %v1025, %v1027
        %v1032 = vsel %vm1030, %v1027, %v1029
        %v1034 = vsel %vm556, %v1023, 0
        %v1036 = vsel %vm560, %v1031, 0
        %v1038 = vsel %vm560, %v1032, 0
        %v1040 = vsel %vm560, %v1029, 0
        %1042 = vmatprep.subr.mxu0 %v1038
        %1043 = vmatpush1.msra.mxu0 %v1036
        %1044 = vmatprep.subr.mxu0 0.0
        %1045 = vmatpush1.msra.mxu0 0.0
        %1046 = vmatprep.subr.mxu0 0.0
        %1047 = vmatpush1.msra.mxu0 0.0
        %1048 = vmatprep.subr.mxu0 0.0
        %1049 = vmatpush1.msra.mxu0 0.0
        %1050 = vmatprep.subr.mxu0 0.0
        %1051 = vmatpush1.msra.mxu0 0.0
        %1052 = vmatprep.subr.mxu0 0.0
        %1053 = vmatpush1.msra.mxu0 0.0
        %1054 = vmatprep.subr.mxu0 0.0
        %1055 = vmatpush1.msra.mxu0 0.0
        %1056 = vmatprep.subr.mxu0 0.0
        %1057 = vmatpush1.msra.mxu0 0.0
        %1058 = vmatprep.subr.mxu0 0.0
        %1059 = vmatpush1.msra.mxu0 0.0
        %1060 = vmatprep.subr.mxu0 0.0
        %1061 = vmatpush1.msra.mxu0 0.0
        %1062 = vmatprep.subr.mxu0 0.0
        %1063 = vmatpush1.msra.mxu0 0.0
        %1064 = vmatprep.subr.mxu0 0.0
        %1065 = vmatpush1.msra.mxu0 0.0
        %1066 = vmatprep.subr.mxu0 0.0
        %1067 = vmatpush1.msra.mxu0 0.0
        %1068 = vmatprep.subr.mxu0 0.0
        %1069 = vmatpush1.msra.mxu0 0.0
        %1070 = vmatprep.subr.mxu0 0.0
        %1071 = vmatpush1.msra.mxu0 0.0
        %1072 = vmatprep.subr.mxu0 0.0
        %1073 = vmatpush1.msra.mxu0 0.0
        %1074 = vmatprep.subr.mxu0 0.0
        %1075 = vmatpush1.msra.mxu0 0.0
        %1076 = vmatprep.subr.mxu0 0.0
        %1077 = vmatpush1.msra.mxu0 0.0
        %1078 = vmatprep.subr.mxu0 0.0
        %1079 = vmatpush1.msra.mxu0 0.0
        %1080 = vmatprep.subr.mxu0 0.0
        %1081 = vmatpush1.msra.mxu0 0.0
        %1082 = vmatprep.subr.mxu0 0.0
        %1083 = vmatpush1.msra.mxu0 0.0
        %1084 = vmatprep.subr.mxu0 0.0
        %1085 = vmatpush1.msra.mxu0 0.0
        %1086 = vmatprep.subr.mxu0 0.0
        %1087 = vmatpush1.msra.mxu0 0.0
        %1088 = vmatprep.subr.mxu0 0.0
        %1089 = vmatpush1.msra.mxu0 0.0
        %1090 = vmatprep.subr.mxu0 0.0
        %1091 = vmatpush1.msra.mxu0 0.0
        %1092 = vmatprep.subr.mxu0 0.0
        %1093 = vmatpush1.msra.mxu0 0.0
        %1094 = vmatprep.subr.mxu0 0.0
        %1095 = vmatpush1.msra.mxu0 0.0
        %1096 = vmatprep.subr.mxu0 0.0
        %1097 = vmatpush1.msra.mxu0 0.0
        %1098 = vmatprep.subr.mxu0 0.0
        %1099 = vmatpush1.msra.mxu0 0.0
        %1100 = vmatprep.subr.mxu0 0.0
        %1101 = vmatpush1.msra.mxu0 0.0
        %1102 = vmatprep.subr.mxu0 0.0
        %1103 = vmatpush1.msra.mxu0 0.0
        %1104 = vmatprep.subr.mxu0 0.0
        %1105 = vmatpush1.msra.mxu0 0.0
        %1106 = vmatprep.mubr.f32.mxu0 0.0
        %1107 = vmatmul.mubr.f32.gmra.mrb[0].mxu0 %v1034
        %v1108 = vpop.f32.mrb[0].mxu0
        %v1109 = vadd.f32 0.0, %v1108
        %v1110 = vpop.f32.mrb[0].mxu0
        %v1111 = vadd.f32 0.0, %v1110
        %1112 = vdwg.mxu0
        %1113 = vmatprep.subr.mxu0 0.0
        %1114 = vmatpush1.msra.mxu0 %v1040
        %1115 = vmatprep.subr.mxu0 0.0
        %1116 = vmatpush1.msra.mxu0 0.0
        %1117 = vmatprep.subr.mxu0 0.0
        %1118 = vmatpush1.msra.mxu0 0.0
        %1119 = vmatprep.subr.mxu0 0.0
        %1120 = vmatpush1.msra.mxu0 0.0
        %1121 = vmatprep.subr.mxu0 0.0
        %1122 = vmatpush1.msra.mxu0 0.0
        %1123 = vmatprep.subr.mxu0 0.0
        %1124 = vmatpush1.msra.mxu0 0.0
        %1125 = vmatprep.subr.mxu0 0.0
        %1126 = vmatpush1.msra.mxu0 0.0
        %1127 = vmatprep.subr.mxu0 0.0
        %1128 = vmatpush1.msra.mxu0 0.0
        %1129 = vmatprep.subr.mxu0 0.0
        %1130 = vmatpush1.msra.mxu0 0.0
        %1131 = vmatprep.subr.mxu0 0.0
        %1132 = vmatpush1.msra.mxu0 0.0
        %1133 = vmatprep.subr.mxu0 0.0
        %1134 = vmatpush1.msra.mxu0 0.0
        %1135 = vmatprep.subr.mxu0 0.0
        %1136 = vmatpush1.msra.mxu0 0.0
        %1137 = vmatprep.subr.mxu0 0.0
        %1138 = vmatpush1.msra.mxu0 0.0
        %1139 = vmatprep.subr.mxu0 0.0
        %1140 = vmatpush1.msra.mxu0 0.0
        %1141 = vmatprep.subr.mxu0 0.0
        %1142 = vmatpush1.msra.mxu0 0.0
        %1143 = vmatprep.subr.mxu0 0.0
        %1144 = vmatpush1.msra.mxu0 0.0
        %1145 = vmatprep.subr.mxu0 0.0
        %1146 = vmatpush1.msra.mxu0 0.0
        %1147 = vmatprep.subr.mxu0 0.0
        %1148 = vmatpush1.msra.mxu0 0.0
        %1149 = vmatprep.subr.mxu0 0.0
        %1150 = vmatpush1.msra.mxu0 0.0
        %1151 = vmatprep.subr.mxu0 0.0
        %1152 = vmatpush1.msra.mxu0 0.0
        %1153 = vmatprep.subr.mxu0 0.0
        %1154 = vmatpush1.msra.mxu0 0.0
        %1155 = vmatprep.subr.mxu0 0.0
        %1156 = vmatpush1.msra.mxu0 0.0
        %1157 = vmatprep.subr.mxu0 0.0
        %1158 = vmatpush1.msra.mxu0 0.0
        %1159 = vmatprep.subr.mxu0 0.0
        %1160 = vmatpush1.msra.mxu0 0.0
        %1161 = vmatprep.subr.mxu0 0.0
        %1162 = vmatpush1.msra.mxu0 0.0
        %1163 = vmatprep.subr.mxu0 0.0
        %1164 = vmatpush1.msra.mxu0 0.0
        %1165 = vmatprep.subr.mxu0 0.0
        %1166 = vmatpush1.msra.mxu0 0.0
        %1167 = vmatprep.subr.mxu0 0.0
        %1168 = vmatpush1.msra.mxu0 0.0
        %1169 = vmatprep.subr.mxu0 0.0
        %1170 = vmatpush1.msra.mxu0 0.0
        %1171 = vmatprep.subr.mxu0 0.0
        %1172 = vmatpush1.msra.mxu0 0.0
        %1173 = vmatprep.subr.mxu0 0.0
        %1174 = vmatpush1.msra.mxu0 0.0
        %1175 = vmatprep.subr.mxu0 0.0
        %1176 = vmatpush1.msra.mxu0 0.0
        %1177 = vmatprep.mubr.f32.mxu0 0.0
        %1178 = vmatmul.mubr.f32.gmra.mrb[0].mxu0 %v1034
        %v1179 = vpop.f32.mrb[0].mxu0
        %v1180 = vadd.f32 0.0, %v1179
        %v1181 = vpop.f32.mrb[0].mxu0
        %1182 = vdwg.mxu0
        %v1183 = vadd.f32 %v1019, %v1109
        %v1184 = vadd.f32 %v1020, %v1111
        %v1185 = vadd.f32 %v1021, %v1180
        %s1186 = scalar_lea.vmem %s2, 32
        %v1187 = vld [vmem:[%s1186] sm:$0xff]
        %1188 = vrot.lane.b32.xlu0 %v539, 109
        %v1189 = vpop.permute.xlu0 %1188
        %1190 = vrot.lane.b32.xlu0 %v546, 109
        %v1191 = vpop.permute.xlu0 %1190
        %1192 = vrot.lane.b32.xlu0 %v540, 109
        %v1193 = vpop.permute.xlu0 %1192
        %vm1194 = vcmask 891904
        %v1195 = vsel %vm1194, %v1189, %v1191
        %v1196 = vsel %vm1194, %v1191, %v1193
        %v1198 = vsel %vm556, %v1187, 0
        %v1200 = vsel %vm560, %v1195, 0
        %v1202 = vsel %vm560, %v1196, 0
        %v1204 = vsel %vm560, %v1193, 0
        %1206 = vmatprep.subr.mxu0 %v1202
        %1207 = vmatpush1.msra.mxu0 %v1200
        %1208 = vmatprep.subr.mxu0 0.0
        %1209 = vmatpush1.msra.mxu0 0.0
        %1210 = vmatprep.subr.mxu0 0.0
        %1211 = vmatpush1.msra.mxu0 0.0
        %1212 = vmatprep.subr.mxu0 0.0
        %1213 = vmatpush1.msra.mxu0 0.0
        %1214 = vmatprep.subr.mxu0 0.0
        %1215 = vmatpush1.msra.mxu0 0.0
        %1216 = vmatprep.subr.mxu0 0.0
        %1217 = vmatpush1.msra.mxu0 0.0
        %1218 = vmatprep.subr.mxu0 0.0
        %1219 = vmatpush1.msra.mxu0 0.0
        %1220 = vmatprep.subr.mxu0 0.0
        %1221 = vmatpush1.msra.mxu0 0.0
        %1222 = vmatprep.subr.mxu0 0.0
        %1223 = vmatpush1.msra.mxu0 0.0
        %1224 = vmatprep.subr.mxu0 0.0
        %1225 = vmatpush1.msra.mxu0 0.0
        %1226 = vmatprep.subr.mxu0 0.0
        %1227 = vmatpush1.msra.mxu0 0.0
        %1228 = vmatprep.subr.mxu0 0.0
        %1229 = vmatpush1.msra.mxu0 0.0
        %1230 = vmatprep.subr.mxu0 0.0
        %1231 = vmatpush1.msra.mxu0 0.0
        %1232 = vmatprep.subr.mxu0 0.0
        %1233 = vmatpush1.msra.mxu0 0.0
        %1234 = vmatprep.subr.mxu0 0.0
        %1235 = vmatpush1.msra.mxu0 0.0
        %1236 = vmatprep.subr.mxu0 0.0
        %1237 = vmatpush1.msra.mxu0 0.0
        %1238 = vmatprep.subr.mxu0 0.0
        %1239 = vmatpush1.msra.mxu0 0.0
        %1240 = vmatprep.subr.mxu0 0.0
        %1241 = vmatpush1.msra.mxu0 0.0
        %1242 = vmatprep.subr.mxu0 0.0
        %1243 = vmatpush1.msra.mxu0 0.0
        %1244 = vmatprep.subr.mxu0 0.0
        %1245 = vmatpush1.msra.mxu0 0.0
        %1246 = vmatprep.subr.mxu0 0.0
        %1247 = vmatpush1.msra.mxu0 0.0
        %1248 = vmatprep.subr.mxu0 0.0
        %1249 = vmatpush1.msra.mxu0 0.0
        %1250 = vmatprep.subr.mxu0 0.0
        %1251 = vmatpush1.msra.mxu0 0.0
        %1252 = vmatprep.subr.mxu0 0.0
        %1253 = vmatpush1.msra.mxu0 0.0
        %1254 = vmatprep.subr.mxu0 0.0
        %1255 = vmatpush1.msra.mxu0 0.0
        %1256 = vmatprep.subr.mxu0 0.0
        %1257 = vmatpush1.msra.mxu0 0.0
        %1258 = vmatprep.subr.mxu0 0.0
        %1259 = vmatpush1.msra.mxu0 0.0
        %1260 = vmatprep.subr.mxu0 0.0
        %1261 = vmatpush1.msra.mxu0 0.0
        %1262 = vmatprep.subr.mxu0 0.0
        %1263 = vmatpush1.msra.mxu0 0.0
        %1264 = vmatprep.subr.mxu0 0.0
        %1265 = vmatpush1.msra.mxu0 0.0
        %1266 = vmatprep.subr.mxu0 0.0
        %1267 = vmatpush1.msra.mxu0 0.0
        %1268 = vmatprep.subr.mxu0 0.0
        %1269 = vmatpush1.msra.mxu0 0.0
        %1270 = vmatprep.mubr.f32.mxu0 0.0
        %1271 = vmatmul.mubr.f32.gmra.mrb[0].mxu0 %v1198
        %v1272 = vpop.f32.mrb[0].mxu0
        %v1273 = vadd.f32 0.0, %v1272
        %v1274 = vpop.f32.mrb[0].mxu0
        %v1275 = vadd.f32 0.0, %v1274
        %1276 = vdwg.mxu0
        %1277 = vmatprep.subr.mxu0 0.0
        %1278 = vmatpush1.msra.mxu0 %v1204
        %1279 = vmatprep.subr.mxu0 0.0
        %1280 = vmatpush1.msra.mxu0 0.0
        %1281 = vmatprep.subr.mxu0 0.0
        %1282 = vmatpush1.msra.mxu0 0.0
        %1283 = vmatprep.subr.mxu0 0.0
        %1284 = vmatpush1.msra.mxu0 0.0
        %1285 = vmatprep.subr.mxu0 0.0
        %1286 = vmatpush1.msra.mxu0 0.0
        %1287 = vmatprep.subr.mxu0 0.0
        %1288 = vmatpush1.msra.mxu0 0.0
        %1289 = vmatprep.subr.mxu0 0.0
        %1290 = vmatpush1.msra.mxu0 0.0
        %1291 = vmatprep.subr.mxu0 0.0
        %1292 = vmatpush1.msra.mxu0 0.0
        %1293 = vmatprep.subr.mxu0 0.0
        %1294 = vmatpush1.msra.mxu0 0.0
        %1295 = vmatprep.subr.mxu0 0.0
        %1296 = vmatpush1.msra.mxu0 0.0
        %1297 = vmatprep.subr.mxu0 0.0
        %1298 = vmatpush1.msra.mxu0 0.0
        %1299 = vmatprep.subr.mxu0 0.0
        %1300 = vmatpush1.msra.mxu0 0.0
        %1301 = vmatprep.subr.mxu0 0.0
        %1302 = vmatpush1.msra.mxu0 0.0
        %1303 = vmatprep.subr.mxu0 0.0
        %1304 = vmatpush1.msra.mxu0 0.0
        %1305 = vmatprep.subr.mxu0 0.0
        %1306 = vmatpush1.msra.mxu0 0.0
        %1307 = vmatprep.subr.mxu0 0.0
        %1308 = vmatpush1.msra.mxu0 0.0
        %1309 = vmatprep.subr.mxu0 0.0
        %1310 = vmatpush1.msra.mxu0 0.0
        %1311 = vmatprep.subr.mxu0 0.0
        %1312 = vmatpush1.msra.mxu0 0.0
        %1313 = vmatprep.subr.mxu0 0.0
        %1314 = vmatpush1.msra.mxu0 0.0
        %1315 = vmatprep.subr.mxu0 0.0
        %1316 = vmatpush1.msra.mxu0 0.0
        %1317 = vmatprep.subr.mxu0 0.0
        %1318 = vmatpush1.msra.mxu0 0.0
        %1319 = vmatprep.subr.mxu0 0.0
        %1320 = vmatpush1.msra.mxu0 0.0
        %1321 = vmatprep.subr.mxu0 0.0
        %1322 = vmatpush1.msra.mxu0 0.0
        %1323 = vmatprep.subr.mxu0 0.0
        %1324 = vmatpush1.msra.mxu0 0.0
        %1325 = vmatprep.subr.mxu0 0.0
        %1326 = vmatpush1.msra.mxu0 0.0
        %1327 = vmatprep.subr.mxu0 0.0
        %1328 = vmatpush1.msra.mxu0 0.0
        %1329 = vmatprep.subr.mxu0 0.0
        %1330 = vmatpush1.msra.mxu0 0.0
        %1331 = vmatprep.subr.mxu0 0.0
        %1332 = vmatpush1.msra.mxu0 0.0
        %1333 = vmatprep.subr.mxu0 0.0
        %1334 = vmatpush1.msra.mxu0 0.0
        %1335 = vmatprep.subr.mxu0 0.0
        %1336 = vmatpush1.msra.mxu0 0.0
        %1337 = vmatprep.subr.mxu0 0.0
        %1338 = vmatpush1.msra.mxu0 0.0
        %1339 = vmatprep.subr.mxu0 0.0
        %1340 = vmatpush1.msra.mxu0 0.0
        %1341 = vmatprep.mubr.f32.mxu0 0.0
        %1342 = vmatmul.mubr.f32.gmra.mrb[0].mxu0 %v1198
        %v1343 = vpop.f32.mrb[0].mxu0
        %v1344 = vadd.f32 0.0, %v1343
        %v1345 = vpop.f32.mrb[0].mxu0
        %1346 = vdwg.mxu0
        %v1347 = vadd.f32 %v1183, %v1273
        %v1348 = vadd.f32 %v1184, %v1275
        %v1349 = vadd.f32 %v1185, %v1344
        %s1350 = scalar_lea.vmem %s2, 40
        %v1351 = vld [vmem:[%s1350] sm:$0xff]
        %1352 = vrot.lane.b32.xlu0 %v539, 108
        %v1353 = vpop.permute.xlu0 %1352
        %1354 = vrot.lane.b32.xlu0 %v546, 108
        %v1355 = vpop.permute.xlu0 %1354
        %1356 = vrot.lane.b32.xlu0 %v540, 108
        %v1357 = vpop.permute.xlu0 %1356
        %vm1358 = vcmask 883712
        %v1359 = vsel %vm1358, %v1353, %v1355
        %v1360 = vsel %vm1358, %v1355, %v1357
        %v1362 = vsel %vm556, %v1351, 0
        %v1364 = vsel %vm560, %v1359, 0
        %v1366 = vsel %vm560, %v1360, 0
        %v1368 = vsel %vm560, %v1357, 0
        %1370 = vmatprep.subr.mxu0 %v1366
        %1371 = vmatpush1.msra.mxu0 %v1364
        %1372 = vmatprep.subr.mxu0 0.0
        %1373 = vmatpush1.msra.mxu0 0.0
        %1374 = vmatprep.subr.mxu0 0.0
        %1375 = vmatpush1.msra.mxu0 0.0
        %1376 = vmatprep.subr.mxu0 0.0
        %1377 = vmatpush1.msra.mxu0 0.0
        %1378 = vmatprep.subr.mxu0 0.0
        %1379 = vmatpush1.msra.mxu0 0.0
        %1380 = vmatprep.subr.mxu0 0.0
        %1381 = vmatpush1.msra.mxu0 0.0
        %1382 = vmatprep.subr.mxu0 0.0
        %1383 = vmatpush1.msra.mxu0 0.0
        %1384 = vmatprep.subr.mxu0 0.0
        %1385 = vmatpush1.msra.mxu0 0.0
        %1386 = vmatprep.subr.mxu0 0.0
        %1387 = vmatpush1.msra.mxu0 0.0
        %1388 = vmatprep.subr.mxu0 0.0
        %1389 = vmatpush1.msra.mxu0 0.0
        %1390 = vmatprep.subr.mxu0 0.0
        %1391 = vmatpush1.msra.mxu0 0.0
        %1392 = vmatprep.subr.mxu0 0.0
        %1393 = vmatpush1.msra.mxu0 0.0
        %1394 = vmatprep.subr.mxu0 0.0
        %1395 = vmatpush1.msra.mxu0 0.0
        %1396 = vmatprep.subr.mxu0 0.0
        %1397 = vmatpush1.msra.mxu0 0.0
        %1398 = vmatprep.subr.mxu0 0.0
        %1399 = vmatpush1.msra.mxu0 0.0
        %1400 = vmatprep.subr.mxu0 0.0
        %1401 = vmatpush1.msra.mxu0 0.0
        %1402 = vmatprep.subr.mxu0 0.0
        %1403 = vmatpush1.msra.mxu0 0.0
        %1404 = vmatprep.subr.mxu0 0.0
        %1405 = vmatpush1.msra.mxu0 0.0
        %1406 = vmatprep.subr.mxu0 0.0
        %1407 = vmatpush1.msra.mxu0 0.0
        %1408 = vmatprep.subr.mxu0 0.0
        %1409 = vmatpush1.msra.mxu0 0.0
        %1410 = vmatprep.subr.mxu0 0.0
        %1411 = vmatpush1.msra.mxu0 0.0
        %1412 = vmatprep.subr.mxu0 0.0
        %1413 = vmatpush1.msra.mxu0 0.0
        %1414 = vmatprep.subr.mxu0 0.0
        %1415 = vmatpush1.msra.mxu0 0.0
        %1416 = vmatprep.subr.mxu0 0.0
        %1417 = vmatpush1.msra.mxu0 0.0
        %1418 = vmatprep.subr.mxu0 0.0
        %1419 = vmatpush1.msra.mxu0 0.0
        %1420 = vmatprep.subr.mxu0 0.0
        %1421 = vmatpush1.msra.mxu0 0.0
        %1422 = vmatprep.subr.mxu0 0.0
        %1423 = vmatpush1.msra.mxu0 0.0
        %1424 = vmatprep.subr.mxu0 0.0
        %1425 = vmatpush1.msra.mxu0 0.0
        %1426 = vmatprep.subr.mxu0 0.0
        %1427 = vmatpush1.msra.mxu0 0.0
        %1428 = vmatprep.subr.mxu0 0.0
        %1429 = vmatpush1.msra.mxu0 0.0
        %1430 = vmatprep.subr.mxu0 0.0
        %1431 = vmatpush1.msra.mxu0 0.0
        %1432 = vmatprep.subr.mxu0 0.0
        %1433 = vmatpush1.msra.mxu0 0.0
        %1434 = vmatprep.mubr.f32.mxu0 0.0
        %1435 = vmatmul.mubr.f32.gmra.mrb[0].mxu0 %v1362
        %v1436 = vpop.f32.mrb[0].mxu0
        %v1437 = vadd.f32 0.0, %v1436
        %v1438 = vpop.f32.mrb[0].mxu0
        %v1439 = vadd.f32 0.0, %v1438
        %1440 = vdwg.mxu0
        %1441 = vmatprep.subr.mxu0 0.0
        %1442 = vmatpush1.msra.mxu0 %v1368
        %1443 = vmatprep.subr.mxu0 0.0
        %1444 = vmatpush1.msra.mxu0 0.0
        %1445 = vmatprep.subr.mxu0 0.0
        %1446 = vmatpush1.msra.mxu0 0.0
        %1447 = vmatprep.subr.mxu0 0.0
        %1448 = vmatpush1.msra.mxu0 0.0
        %1449 = vmatprep.subr.mxu0 0.0
        %1450 = vmatpush1.msra.mxu0 0.0
        %1451 = vmatprep.subr.mxu0 0.0
        %1452 = vmatpush1.msra.mxu0 0.0
        %1453 = vmatprep.subr.mxu0 0.0
        %1454 = vmatpush1.msra.mxu0 0.0
        %1455 = vmatprep.subr.mxu0 0.0
        %1456 = vmatpush1.msra.mxu0 0.0
        %1457 = vmatprep.subr.mxu0 0.0
        %1458 = vmatpush1.msra.mxu0 0.0
        %1459 = vmatprep.subr.mxu0 0.0
        %1460 = vmatpush1.msra.mxu0 0.0
        %1461 = vmatprep.subr.mxu0 0.0
        %1462 = vmatpush1.msra.mxu0 0.0
        %1463 = vmatprep.subr.mxu0 0.0
        %1464 = vmatpush1.msra.mxu0 0.0
        %1465 = vmatprep.subr.mxu0 0.0
        %1466 = vmatpush1.msra.mxu0 0.0
        %1467 = vmatprep.subr.mxu0 0.0
        %1468 = vmatpush1.msra.mxu0 0.0
        %1469 = vmatprep.subr.mxu0 0.0
        %1470 = vmatpush1.msra.mxu0 0.0
        %1471 = vmatprep.subr.mxu0 0.0
        %1472 = vmatpush1.msra.mxu0 0.0
        %1473 = vmatprep.subr.mxu0 0.0
        %1474 = vmatpush1.msra.mxu0 0.0
        %1475 = vmatprep.subr.mxu0 0.0
        %1476 = vmatpush1.msra.mxu0 0.0
        %1477 = vmatprep.subr.mxu0 0.0
        %1478 = vmatpush1.msra.mxu0 0.0
        %1479 = vmatprep.subr.mxu0 0.0
        %1480 = vmatpush1.msra.mxu0 0.0
        %1481 = vmatprep.subr.mxu0 0.0
        %1482 = vmatpush1.msra.mxu0 0.0
        %1483 = vmatprep.subr.mxu0 0.0
        %1484 = vmatpush1.msra.mxu0 0.0
        %1485 = vmatprep.subr.mxu0 0.0
        %1486 = vmatpush1.msra.mxu0 0.0
        %1487 = vmatprep.subr.mxu0 0.0
        %1488 = vmatpush1.msra.mxu0 0.0
        %1489 = vmatprep.subr.mxu0 0.0
        %1490 = vmatpush1.msra.mxu0 0.0
        %1491 = vmatprep.subr.mxu0 0.0
        %1492 = vmatpush1.msra.mxu0 0.0
        %1493 = vmatprep.subr.mxu0 0.0
        %1494 = vmatpush1.msra.mxu0 0.0
        %1495 = vmatprep.subr.mxu0 0.0
        %1496 = vmatpush1.msra.mxu0 0.0
        %1497 = vmatprep.subr.mxu0 0.0
        %1498 = vmatpush1.msra.mxu0 0.0
        %1499 = vmatprep.subr.mxu0 0.0
        %1500 = vmatpush1.msra.mxu0 0.0
        %1501 = vmatprep.subr.mxu0 0.0
        %1502 = vmatpush1.msra.mxu0 0.0
        %1503 = vmatprep.subr.mxu0 0.0
        %1504 = vmatpush1.msra.mxu0 0.0
        %1505 = vmatprep.mubr.f32.mxu0 0.0
        %1506 = vmatmul.mubr.f32.gmra.mrb[0].mxu0 %v1362
        %v1507 = vpop.f32.mrb[0].mxu0
        %v1508 = vadd.f32 0.0, %v1507
        %v1509 = vpop.f32.mrb[0].mxu0
        %1510 = vdwg.mxu0
        %v1511 = vadd.f32 %v1347, %v1437
        %v1512 = vadd.f32 %v1348, %v1439
        %v1513 = vadd.f32 %v1349, %v1508
        %s1514 = scalar_lea.vmem %s2, 48
        %v1515 = vld [vmem:[%s1514] sm:$0xff]
        %1516 = vrot.lane.b32.xlu0 %v539, 92
        %v1517 = vpop.permute.xlu0 %1516
        %1518 = vrot.lane.b32.xlu0 %v546, 92
        %v1519 = vpop.permute.xlu0 %1518
        %1520 = vrot.lane.b32.xlu0 %v540, 92
        %v1521 = vpop.permute.xlu0 %1520
        %vm1522 = vcmask 752640
        %v1523 = vsel %vm1522, %v1517, %v1519
        %v1524 = vsel %vm1522, %v1519, %v1521
        %v1526 = vsel %vm556, %v1515, 0
        %v1528 = vsel %vm560, %v1523, 0
        %v1530 = vsel %vm560, %v1524, 0
        %v1532 = vsel %vm560, %v1521, 0
        %1534 = vmatprep.subr.mxu0 %v1530
        %1535 = vmatpush1.msra.mxu0 %v1528
        %1536 = vmatprep.subr.mxu0 0.0
        %1537 = vmatpush1.msra.mxu0 0.0
        %1538 = vmatprep.subr.mxu0 0.0
        %1539 = vmatpush1.msra.mxu0 0.0
        %1540 = vmatprep.subr.mxu0 0.0
        %1541 = vmatpush1.msra.mxu0 0.0
        %1542 = vmatprep.subr.mxu0 0.0
        %1543 = vmatpush1.msra.mxu0 0.0
        %1544 = vmatprep.subr.mxu0 0.0
        %1545 = vmatpush1.msra.mxu0 0.0
        %1546 = vmatprep.subr.mxu0 0.0
        %1547 = vmatpush1.msra.mxu0 0.0
        %1548 = vmatprep.subr.mxu0 0.0
        %1549 = vmatpush1.msra.mxu0 0.0
        %1550 = vmatprep.subr.mxu0 0.0
        %1551 = vmatpush1.msra.mxu0 0.0
        %1552 = vmatprep.subr.mxu0 0.0
        %1553 = vmatpush1.msra.mxu0 0.0
        %1554 = vmatprep.subr.mxu0 0.0
        %1555 = vmatpush1.msra.mxu0 0.0
        %1556 = vmatprep.subr.mxu0 0.0
        %1557 = vmatpush1.msra.mxu0 0.0
        %1558 = vmatprep.subr.mxu0 0.0
        %1559 = vmatpush1.msra.mxu0 0.0
        %1560 = vmatprep.subr.mxu0 0.0
        %1561 = vmatpush1.msra.mxu0 0.0
        %1562 = vmatprep.subr.mxu0 0.0
        %1563 = vmatpush1.msra.mxu0 0.0
        %1564 = vmatprep.subr.mxu0 0.0
        %1565 = vmatpush1.msra.mxu0 0.0
        %1566 = vmatprep.subr.mxu0 0.0
        %1567 = vmatpush1.msra.mxu0 0.0
        %1568 = vmatprep.subr.mxu0 0.0
        %1569 = vmatpush1.msra.mxu0 0.0
        %1570 = vmatprep.subr.mxu0 0.0
        %1571 = vmatpush1.msra.mxu0 0.0
        %1572 = vmatprep.subr.mxu0 0.0
        %1573 = vmatpush1.msra.mxu0 0.0
        %1574 = vmatprep.subr.mxu0 0.0
        %1575 = vmatpush1.msra.mxu0 0.0
        %1576 = vmatprep.subr.mxu0 0.0
        %1577 = vmatpush1.msra.mxu0 0.0
        %1578 = vmatprep.subr.mxu0 0.0
        %1579 = vmatpush1.msra.mxu0 0.0
        %1580 = vmatprep.subr.mxu0 0.0
        %1581 = vmatpush1.msra.mxu0 0.0
        %1582 = vmatprep.subr.mxu0 0.0
        %1583 = vmatpush1.msra.mxu0 0.0
        %1584 = vmatprep.subr.mxu0 0.0
        %1585 = vmatpush1.msra.mxu0 0.0
        %1586 = vmatprep.subr.mxu0 0.0
        %1587 = vmatpush1.msra.mxu0 0.0
        %1588 = vmatprep.subr.mxu0 0.0
        %1589 = vmatpush1.msra.mxu0 0.0
        %1590 = vmatprep.subr.mxu0 0.0
        %1591 = vmatpush1.msra.mxu0 0.0
        %1592 = vmatprep.subr.mxu0 0.0
        %1593 = vmatpush1.msra.mxu0 0.0
        %1594 = vmatprep.subr.mxu0 0.0
        %1595 = vmatpush1.msra.mxu0 0.0
        %1596 = vmatprep.subr.mxu0 0.0
        %1597 = vmatpush1.msra.mxu0 0.0
        %1598 = vmatprep.mubr.f32.mxu0 0.0
        %1599 = vmatmul.mubr.f32.gmra.mrb[0].mxu0 %v1526
        %v1600 = vpop.f32.mrb[0].mxu0
        %v1601 = vadd.f32 0.0, %v1600
        %v1602 = vpop.f32.mrb[0].mxu0
        %v1603 = vadd.f32 0.0, %v1602
        %1604 = vdwg.mxu0
        %1605 = vmatprep.subr.mxu0 0.0
        %1606 = vmatpush1.msra.mxu0 %v1532
        %1607 = vmatprep.subr.mxu0 0.0
        %1608 = vmatpush1.msra.mxu0 0.0
        %1609 = vmatprep.subr.mxu0 0.0
        %1610 = vmatpush1.msra.mxu0 0.0
        %1611 = vmatprep.subr.mxu0 0.0
        %1612 = vmatpush1.msra.mxu0 0.0
        %1613 = vmatprep.subr.mxu0 0.0
        %1614 = vmatpush1.msra.mxu0 0.0
        %1615 = vmatprep.subr.mxu0 0.0
        %1616 = vmatpush1.msra.mxu0 0.0
        %1617 = vmatprep.subr.mxu0 0.0
        %1618 = vmatpush1.msra.mxu0 0.0
        %1619 = vmatprep.subr.mxu0 0.0
        %1620 = vmatpush1.msra.mxu0 0.0
        %1621 = vmatprep.subr.mxu0 0.0
        %1622 = vmatpush1.msra.mxu0 0.0
        %1623 = vmatprep.subr.mxu0 0.0
        %1624 = vmatpush1.msra.mxu0 0.0
        %1625 = vmatprep.subr.mxu0 0.0
        %1626 = vmatpush1.msra.mxu0 0.0
        %1627 = vmatprep.subr.mxu0 0.0
        %1628 = vmatpush1.msra.mxu0 0.0
        %1629 = vmatprep.subr.mxu0 0.0
        %1630 = vmatpush1.msra.mxu0 0.0
        %1631 = vmatprep.subr.mxu0 0.0
        %1632 = vmatpush1.msra.mxu0 0.0
        %1633 = vmatprep.subr.mxu0 0.0
        %1634 = vmatpush1.msra.mxu0 0.0
        %1635 = vmatprep.subr.mxu0 0.0
        %1636 = vmatpush1.msra.mxu0 0.0
        %1637 = vmatprep.subr.mxu0 0.0
        %1638 = vmatpush1.msra.mxu0 0.0
        %1639 = vmatprep.subr.mxu0 0.0
        %1640 = vmatpush1.msra.mxu0 0.0
        %1641 = vmatprep.subr.mxu0 0.0
        %1642 = vmatpush1.msra.mxu0 0.0
        %1643 = vmatprep.subr.mxu0 0.0
        %1644 = vmatpush1.msra.mxu0 0.0
        %1645 = vmatprep.subr.mxu0 0.0
        %1646 = vmatpush1.msra.mxu0 0.0
        %1647 = vmatprep.subr.mxu0 0.0
        %1648 = vmatpush1.msra.mxu0 0.0
        %1649 = vmatprep.subr.mxu0 0.0
        %1650 = vmatpush1.msra.mxu0 0.0
        %1651 = vmatprep.subr.mxu0 0.0
        %1652 = vmatpush1.msra.mxu0 0.0
        %1653 = vmatprep.subr.mxu0 0.0
        %1654 = vmatpush1.msra.mxu0 0.0
        %1655 = vmatprep.subr.mxu0 0.0
        %1656 = vmatpush1.msra.mxu0 0.0
        %1657 = vmatprep.subr.mxu0 0.0
        %1658 = vmatpush1.msra.mxu0 0.0
        %1659 = vmatprep.subr.mxu0 0.0
        %1660 = vmatpush1.msra.mxu0 0.0
        %1661 = vmatprep.subr.mxu0 0.0
        %1662 = vmatpush1.msra.mxu0 0.0
        %1663 = vmatprep.subr.mxu0 0.0
        %1664 = vmatpush1.msra.mxu0 0.0
        %1665 = vmatprep.subr.mxu0 0.0
        %1666 = vmatpush1.msra.mxu0 0.0
        %1667 = vmatprep.subr.mxu0 0.0
        %1668 = vmatpush1.msra.mxu0 0.0
        %1669 = vmatprep.mubr.f32.mxu0 0.0
        %1670 = vmatmul.mubr.f32.gmra.mrb[0].mxu0 %v1526
        %v1671 = vpop.f32.mrb[0].mxu0
        %v1672 = vadd.f32 0.0, %v1671
        %v1673 = vpop.f32.mrb[0].mxu0
        %1674 = vdwg.mxu0
        %v1675 = vadd.f32 %v1511, %v1601
        %v1676 = vadd.f32 %v1512, %v1603
        %v1677 = vadd.f32 %v1513, %v1672
        %s1678 = scalar_lea.vmem %s2, 56
        %v1679 = vld [vmem:[%s1678] sm:$0xff]
        %1680 = vrot.lane.b32.xlu0 %v539, 91
        %v1681 = vpop.permute.xlu0 %1680
        %1682 = vrot.lane.b32.xlu0 %v546, 91
        %v1683 = vpop.permute.xlu0 %1682
        %1684 = vrot.lane.b32.xlu0 %v540, 91
        %v1685 = vpop.permute.xlu0 %1684
        %vm1686 = vcmask 744448
        %v1687 = vsel %vm1686, %v1681, %v1683
        %v1688 = vsel %vm1686, %v1683, %v1685
        %v1690 = vsel %vm556, %v1679, 0
        %v1692 = vsel %vm560, %v1687, 0
        %v1694 = vsel %vm560, %v1688, 0
        %v1696 = vsel %vm560, %v1685, 0
        %1698 = vmatprep.subr.mxu0 %v1694
        %1699 = vmatpush1.msra.mxu0 %v1692
        %1700 = vmatprep.subr.mxu0 0.0
        %1701 = vmatpush1.msra.mxu0 0.0
        %1702 = vmatprep.subr.mxu0 0.0
        %1703 = vmatpush1.msra.mxu0 0.0
        %1704 = vmatprep.subr.mxu0 0.0
        %1705 = vmatpush1.msra.mxu0 0.0
        %1706 = vmatprep.subr.mxu0 0.0
        %1707 = vmatpush1.msra.mxu0 0.0
        %1708 = vmatprep.subr.mxu0 0.0
        %1709 = vmatpush1.msra.mxu0 0.0
        %1710 = vmatprep.subr.mxu0 0.0
        %1711 = vmatpush1.msra.mxu0 0.0
        %1712 = vmatprep.subr.mxu0 0.0
        %1713 = vmatpush1.msra.mxu0 0.0
        %1714 = vmatprep.subr.mxu0 0.0
        %1715 = vmatpush1.msra.mxu0 0.0
        %1716 = vmatprep.subr.mxu0 0.0
        %1717 = vmatpush1.msra.mxu0 0.0
        %1718 = vmatprep.subr.mxu0 0.0
        %1719 = vmatpush1.msra.mxu0 0.0
        %1720 = vmatprep.subr.mxu0 0.0
        %1721 = vmatpush1.msra.mxu0 0.0
        %1722 = vmatprep.subr.mxu0 0.0
        %1723 = vmatpush1.msra.mxu0 0.0
        %1724 = vmatprep.subr.mxu0 0.0
        %1725 = vmatpush1.msra.mxu0 0.0
        %1726 = vmatprep.subr.mxu0 0.0
        %1727 = vmatpush1.msra.mxu0 0.0
        %1728 = vmatprep.subr.mxu0 0.0
        %1729 = vmatpush1.msra.mxu0 0.0
        %1730 = vmatprep.subr.mxu0 0.0
        %1731 = vmatpush1.msra.mxu0 0.0
        %1732 = vmatprep.subr.mxu0 0.0
        %1733 = vmatpush1.msra.mxu0 0.0
        %1734 = vmatprep.subr.mxu0 0.0
        %1735 = vmatpush1.msra.mxu0 0.0
        %1736 = vmatprep.subr.mxu0 0.0
        %1737 = vmatpush1.msra.mxu0 0.0
        %1738 = vmatprep.subr.mxu0 0.0
        %1739 = vmatpush1.msra.mxu0 0.0
        %1740 = vmatprep.subr.mxu0 0.0
        %1741 = vmatpush1.msra.mxu0 0.0
        %1742 = vmatprep.subr.mxu0 0.0
        %1743 = vmatpush1.msra.mxu0 0.0
        %1744 = vmatprep.subr.mxu0 0.0
        %1745 = vmatpush1.msra.mxu0 0.0
        %1746 = vmatprep.subr.mxu0 0.0
        %1747 = vmatpush1.msra.mxu0 0.0
        %1748 = vmatprep.subr.mxu0 0.0
        %1749 = vmatpush1.msra.mxu0 0.0
        %1750 = vmatprep.subr.mxu0 0.0
        %1751 = vmatpush1.msra.mxu0 0.0
        %1752 = vmatprep.subr.mxu0 0.0
        %1753 = vmatpush1.msra.mxu0 0.0
        %1754 = vmatprep.subr.mxu0 0.0
        %1755 = vmatpush1.msra.mxu0 0.0
        %1756 = vmatprep.subr.mxu0 0.0
        %1757 = vmatpush1.msra.mxu0 0.0
        %1758 = vmatprep.subr.mxu0 0.0
        %1759 = vmatpush1.msra.mxu0 0.0
        %1760 = vmatprep.subr.mxu0 0.0
        %1761 = vmatpush1.msra.mxu0 0.0
        %1762 = vmatprep.mubr.f32.mxu0 0.0
        %1763 = vmatmul.mubr.f32.gmra.mrb[0].mxu0 %v1690
        %v1764 = vpop.f32.mrb[0].mxu0
        %v1765 = vadd.f32 0.0, %v1764
        %v1766 = vpop.f32.mrb[0].mxu0
        %v1767 = vadd.f32 0.0, %v1766
        %1768 = vdwg.mxu0
        %1769 = vmatprep.subr.mxu0 0.0
        %1770 = vmatpush1.msra.mxu0 %v1696
        %1771 = vmatprep.subr.mxu0 0.0
        %1772 = vmatpush1.msra.mxu0 0.0
        %1773 = vmatprep.subr.mxu0 0.0
        %1774 = vmatpush1.msra.mxu0 0.0
        %1775 = vmatprep.subr.mxu0 0.0
        %1776 = vmatpush1.msra.mxu0 0.0
        %1777 = vmatprep.subr.mxu0 0.0
        %1778 = vmatpush1.msra.mxu0 0.0
        %1779 = vmatprep.subr.mxu0 0.0
        %1780 = vmatpush1.msra.mxu0 0.0
        %1781 = vmatprep.subr.mxu0 0.0
        %1782 = vmatpush1.msra.mxu0 0.0
        %1783 = vmatprep.subr.mxu0 0.0
        %1784 = vmatpush1.msra.mxu0 0.0
        %1785 = vmatprep.subr.mxu0 0.0
        %1786 = vmatpush1.msra.mxu0 0.0
        %1787 = vmatprep.subr.mxu0 0.0
        %1788 = vmatpush1.msra.mxu0 0.0
        %1789 = vmatprep.subr.mxu0 0.0
        %1790 = vmatpush1.msra.mxu0 0.0
        %1791 = vmatprep.subr.mxu0 0.0
        %1792 = vmatpush1.msra.mxu0 0.0
        %1793 = vmatprep.subr.mxu0 0.0
        %1794 = vmatpush1.msra.mxu0 0.0
        %1795 = vmatprep.subr.mxu0 0.0
        %1796 = vmatpush1.msra.mxu0 0.0
        %1797 = vmatprep.subr.mxu0 0.0
        %1798 = vmatpush1.msra.mxu0 0.0
        %1799 = vmatprep.subr.mxu0 0.0
        %1800 = vmatpush1.msra.mxu0 0.0
        %1801 = vmatprep.subr.mxu0 0.0
        %1802 = vmatpush1.msra.mxu0 0.0
        %1803 = vmatprep.subr.mxu0 0.0
        %1804 = vmatpush1.msra.mxu0 0.0
        %1805 = vmatprep.subr.mxu0 0.0
        %1806 = vmatpush1.msra.mxu0 0.0
        %1807 = vmatprep.subr.mxu0 0.0
        %1808 = vmatpush1.msra.mxu0 0.0
        %1809 = vmatprep.subr.mxu0 0.0
        %1810 = vmatpush1.msra.mxu0 0.0
        %1811 = vmatprep.subr.mxu0 0.0
        %1812 = vmatpush1.msra.mxu0 0.0
        %1813 = vmatprep.subr.mxu0 0.0
        %1814 = vmatpush1.msra.mxu0 0.0
        %1815 = vmatprep.subr.mxu0 0.0
        %1816 = vmatpush1.msra.mxu0 0.0
        %1817 = vmatprep.subr.mxu0 0.0
        %1818 = vmatpush1.msra.mxu0 0.0
        %1819 = vmatprep.subr.mxu0 0.0
        %1820 = vmatpush1.msra.mxu0 0.0
        %1821 = vmatprep.subr.mxu0 0.0
        %1822 = vmatpush1.msra.mxu0 0.0
        %1823 = vmatprep.subr.mxu0 0.0
        %1824 = vmatpush1.msra.mxu0 0.0
        %1825 = vmatprep.subr.mxu0 0.0
        %1826 = vmatpush1.msra.mxu0 0.0
        %1827 = vmatprep.subr.mxu0 0.0
        %1828 = vmatpush1.msra.mxu0 0.0
        %1829 = vmatprep.subr.mxu0 0.0
        %1830 = vmatpush1.msra.mxu0 0.0
        %1831 = vmatprep.subr.mxu0 0.0
        %1832 = vmatpush1.msra.mxu0 0.0
        %1833 = vmatprep.mubr.f32.mxu0 0.0
        %1834 = vmatmul.mubr.f32.gmra.mrb[0].mxu0 %v1690
        %v1835 = vpop.f32.mrb[0].mxu0
        %v1836 = vadd.f32 0.0, %v1835
        %v1837 = vpop.f32.mrb[0].mxu0
        %1838 = vdwg.mxu0
        %v1839 = vadd.f32 %v1675, %v1765
        %v1840 = vadd.f32 %v1676, %v1767
        %v1841 = vadd.f32 %v1677, %v1836
        %s1842 = scalar_lea.vmem %s2, 64
        %v1843 = vld [vmem:[%s1842] sm:$0xff]
        %1844 = vrot.lane.b32.xlu0 %v539, 90
        %v1845 = vpop.permute.xlu0 %1844
        %1846 = vrot.lane.b32.xlu0 %v546, 90
        %v1847 = vpop.permute.xlu0 %1846
        %1848 = vrot.lane.b32.xlu0 %v540, 90
        %v1849 = vpop.permute.xlu0 %1848
        %vm1850 = vcmask 736256
        %v1851 = vsel %vm1850, %v1845, %v1847
        %v1852 = vsel %vm1850, %v1847, %v1849
        %v1854 = vsel %vm556, %v1843, 0
        %v1856 = vsel %vm560, %v1851, 0
        %v1858 = vsel %vm560, %v1852, 0
        %v1860 = vsel %vm560, %v1849, 0
        %1862 = vmatprep.subr.mxu0 %v1858
        %1863 = vmatpush1.msra.mxu0 %v1856
        %1864 = vmatprep.subr.mxu0 0.0
        %1865 = vmatpush1.msra.mxu0 0.0
        %1866 = vmatprep.subr.mxu0 0.0
        %1867 = vmatpush1.msra.mxu0 0.0
        %1868 = vmatprep.subr.mxu0 0.0
        %1869 = vmatpush1.msra.mxu0 0.0
        %1870 = vmatprep.subr.mxu0 0.0
        %1871 = vmatpush1.msra.mxu0 0.0
        %1872 = vmatprep.subr.mxu0 0.0
        %1873 = vmatpush1.msra.mxu0 0.0
        %1874 = vmatprep.subr.mxu0 0.0
        %1875 = vmatpush1.msra.mxu0 0.0
        %1876 = vmatprep.subr.mxu0 0.0
        %1877 = vmatpush1.msra.mxu0 0.0
        %1878 = vmatprep.subr.mxu0 0.0
        %1879 = vmatpush1.msra.mxu0 0.0
        %1880 = vmatprep.subr.mxu0 0.0
        %1881 = vmatpush1.msra.mxu0 0.0
        %1882 = vmatprep.subr.mxu0 0.0
        %1883 = vmatpush1.msra.mxu0 0.0
        %1884 = vmatprep.subr.mxu0 0.0
        %1885 = vmatpush1.msra.mxu0 0.0
        %1886 = vmatprep.subr.mxu0 0.0
        %1887 = vmatpush1.msra.mxu0 0.0
        %1888 = vmatprep.subr.mxu0 0.0
        %1889 = vmatpush1.msra.mxu0 0.0
        %1890 = vmatprep.subr.mxu0 0.0
        %1891 = vmatpush1.msra.mxu0 0.0
        %1892 = vmatprep.subr.mxu0 0.0
        %1893 = vmatpush1.msra.mxu0 0.0
        %1894 = vmatprep.subr.mxu0 0.0
        %1895 = vmatpush1.msra.mxu0 0.0
        %1896 = vmatprep.subr.mxu0 0.0
        %1897 = vmatpush1.msra.mxu0 0.0
        %1898 = vmatprep.subr.mxu0 0.0
        %1899 = vmatpush1.msra.mxu0 0.0
        %1900 = vmatprep.subr.mxu0 0.0
        %1901 = vmatpush1.msra.mxu0 0.0
        %1902 = vmatprep.subr.mxu0 0.0
        %1903 = vmatpush1.msra.mxu0 0.0
        %1904 = vmatprep.subr.mxu0 0.0
        %1905 = vmatpush1.msra.mxu0 0.0
        %1906 = vmatprep.subr.mxu0 0.0
        %1907 = vmatpush1.msra.mxu0 0.0
        %1908 = vmatprep.subr.mxu0 0.0
        %1909 = vmatpush1.msra.mxu0 0.0
        %1910 = vmatprep.subr.mxu0 0.0
        %1911 = vmatpush1.msra.mxu0 0.0
        %1912 = vmatprep.subr.mxu0 0.0
        %1913 = vmatpush1.msra.mxu0 0.0
        %1914 = vmatprep.subr.mxu0 0.0
        %1915 = vmatpush1.msra.mxu0 0.0
        %1916 = vmatprep.subr.mxu0 0.0
        %1917 = vmatpush1.msra.mxu0 0.0
        %1918 = vmatprep.subr.mxu0 0.0
        %1919 = vmatpush1.msra.mxu0 0.0
        %1920 = vmatprep.subr.mxu0 0.0
        %1921 = vmatpush1.msra.mxu0 0.0
        %1922 = vmatprep.subr.mxu0 0.0
        %1923 = vmatpush1.msra.mxu0 0.0
        %1924 = vmatprep.subr.mxu0 0.0
        %1925 = vmatpush1.msra.mxu0 0.0
        %1926 = vmatprep.mubr.f32.mxu0 0.0
        %1927 = vmatmul.mubr.f32.gmra.mrb[0].mxu0 %v1854
        %v1928 = vpop.f32.mrb[0].mxu0
        %v1929 = vadd.f32 0.0, %v1928
        %v1930 = vpop.f32.mrb[0].mxu0
        %v1931 = vadd.f32 0.0, %v1930
        %1932 = vdwg.mxu0
        %1933 = vmatprep.subr.mxu0 0.0
        %1934 = vmatpush1.msra.mxu0 %v1860
        %1935 = vmatprep.subr.mxu0 0.0
        %1936 = vmatpush1.msra.mxu0 0.0
        %1937 = vmatprep.subr.mxu0 0.0
        %1938 = vmatpush1.msra.mxu0 0.0
        %1939 = vmatprep.subr.mxu0 0.0
        %1940 = vmatpush1.msra.mxu0 0.0
        %1941 = vmatprep.subr.mxu0 0.0
        %1942 = vmatpush1.msra.mxu0 0.0
        %1943 = vmatprep.subr.mxu0 0.0
        %1944 = vmatpush1.msra.mxu0 0.0
        %1945 = vmatprep.subr.mxu0 0.0
        %1946 = vmatpush1.msra.mxu0 0.0
        %1947 = vmatprep.subr.mxu0 0.0
        %1948 = vmatpush1.msra.mxu0 0.0
        %1949 = vmatprep.subr.mxu0 0.0
        %1950 = vmatpush1.msra.mxu0 0.0
        %1951 = vmatprep.subr.mxu0 0.0
        %1952 = vmatpush1.msra.mxu0 0.0
        %1953 = vmatprep.subr.mxu0 0.0
        %1954 = vmatpush1.msra.mxu0 0.0
        %1955 = vmatprep.subr.mxu0 0.0
        %1956 = vmatpush1.msra.mxu0 0.0
        %1957 = vmatprep.subr.mxu0 0.0
        %1958 = vmatpush1.msra.mxu0 0.0
        %1959 = vmatprep.subr.mxu0 0.0
        %1960 = vmatpush1.msra.mxu0 0.0
        %1961 = vmatprep.subr.mxu0 0.0
        %1962 = vmatpush1.msra.mxu0 0.0
        %1963 = vmatprep.subr.mxu0 0.0
        %1964 = vmatpush1.msra.mxu0 0.0
        %1965 = vmatprep.subr.mxu0 0.0
        %1966 = vmatpush1.msra.mxu0 0.0
        %1967 = vmatprep.subr.mxu0 0.0
        %1968 = vmatpush1.msra.mxu0 0.0
        %1969 = vmatprep.subr.mxu0 0.0
        %1970 = vmatpush1.msra.mxu0 0.0
        %1971 = vmatprep.subr.mxu0 0.0
        %1972 = vmatpush1.msra.mxu0 0.0
        %1973 = vmatprep.subr.mxu0 0.0
        %1974 = vmatpush1.msra.mxu0 0.0
        %1975 = vmatprep.subr.mxu0 0.0
        %1976 = vmatpush1.msra.mxu0 0.0
        %1977 = vmatprep.subr.mxu0 0.0
        %1978 = vmatpush1.msra.mxu0 0.0
        %1979 = vmatprep.subr.mxu0 0.0
        %1980 = vmatpush1.msra.mxu0 0.0
        %1981 = vmatprep.subr.mxu0 0.0
        %1982 = vmatpush1.msra.mxu0 0.0
        %1983 = vmatprep.subr.mxu0 0.0
        %1984 = vmatpush1.msra.mxu0 0.0
        %1985 = vmatprep.subr.mxu0 0.0
        %1986 = vmatpush1.msra.mxu0 0.0
        %1987 = vmatprep.subr.mxu0 0.0
        %1988 = vmatpush1.msra.mxu0 0.0
        %1989 = vmatprep.subr.mxu0 0.0
        %1990 = vmatpush1.msra.mxu0 0.0
        %1991 = vmatprep.subr.mxu0 0.0
        %1992 = vmatpush1.msra.mxu0 0.0
        %1993 = vmatprep.subr.mxu0 0.0
        %1994 = vmatpush1.msra.mxu0 0.0
        %1995 = vmatprep.subr.mxu0 0.0
        %1996 = vmatpush1.msra.mxu0 0.0
        %1997 = vmatprep.mubr.f32.mxu0 0.0
        %1998 = vmatmul.mubr.f32.gmra.mrb[0].mxu0 %v1854
        %v1999 = vpop.f32.mrb[0].mxu0
        %v2000 = vadd.f32 0.0, %v1999
        %v2001 = vpop.f32.mrb[0].mxu0
        %2002 = vdwg.mxu0
        %v2003 = vadd.f32 %v1839, %v1929
        %v2004 = vadd.f32 %v1840, %v1931
        %v2005 = vadd.f32 %v1841, %v2000
        %v2006 = vstv %s536
        %v2007 = vmul.f32 %v2003, %v2006
        %v2008 = vmul.f32 %v2004, %v2006
        %v2009 = vmul.f32 %v2005, %v2006
        %v2010 = vld [vmem:[%s5] sm:$0xff]
        %2012 = vset.pattern.permute.xlu0 0
        %2013 = vperm.xlu0 %2012, %v2010
        %v2014 = vpop.permute.xlu0 %2013
        %v2016 = vadd.f32 %v2007, %v2014
        %v2017 = vadd.f32 %v2008, %v2014
        %v2018 = vadd.f32 %v2009, %v2014
        %2019 = vst [vmem:[%s302] sm:$0xff] %v2016
        %2020 = vst [vmem:[%s302 + $0x8] sm:$0xff] %v2017
        %vm2021 = vcmask 261120
        %2022 = vst.msk [vmem:[%s302 + $0x10] sm:$0xff] %vm2021, %v2018
        %s2023 = sand.u32 %s165, 1
        %s2024 = scalar_lea.sflag [#allocation3], %s2023
        %s2025 = sand.u32 %s165, 1
        %s2026 = smul.addr %s2025, 24
        %s2027 = scalar_lea.vmem [#allocation2], %s2026
        %s2028 = sand.u32 %s26, 1
        %s2029 = scalar_lea.sflag [#allocation5], %s2028
        %s2030 = sand.u32 %s191, 1
        %s2031 = scalar_lea.vmem [#allocation4], %s2030
        %s2032 = sand.u32 %s26, 1
        %s2033 = scalar_lea.sflag [#allocation5], %s2032
        %s2034 = sand.u32 %s217, 1
        %s2035 = scalar_lea.vmem [#allocation6], %s2034
        // Predicated region
        $region45: #{tpu_custom_call.1} parent=43 // pred_check
          %p2036 = pneg %p175
        $region46: #{tpu_custom_call.1} parent=43 // pred_check_branch
          %2038 = sbr.rel (%p2036) target = $region48
        $region47: #{tpu_custom_call.1} parent=43 // pred_region
          %s2040 = ssub.s32 384, 384
          %2041 = vsyncadd %s2024, %s2040
          %s2042 = smul.addr %s26, 3
          %s2043 = smul.addr %s2042, 128
          %s2044 = scalar_lea.hbm %s6, %s2043
          %s2046 = sshll.u32 %s2027, 4
          %s2047 = int_to_ptr.vmem [resolvable:$true] %s2046
          %2049 = dma.vmem_to_hbm [thread:$0]  %s2047, 384, %s2044, %s2024
        $region48: #{tpu_custom_call.1} parent=43 // pred_fallthru
          _
        // Predicated region
        $region49: #{tpu_custom_call.1} parent=43 // pred_check
          %p2050 = pneg %p201
        $region50: #{tpu_custom_call.1} parent=43 // pred_check_branch
          %2052 = sbr.rel (%p2050) target = $region52
        $region51: #{tpu_custom_call.1} parent=43 // pred_region
          %s2054 = ssub.s32 16, 16
          %2055 = vsyncadd %s2029, %s2054
          %s2056 = smul.addr %s26, 16
          %s2057 = scalar_lea.hbm %s7, %s2056
          %s2059 = sshll.u32 %s2031, 4
          %s2060 = int_to_ptr.vmem [resolvable:$true] %s2059
          %2062 = dma.vmem_to_hbm [thread:$0]  %s2060, 16, %s2057, %s2029
        $region52: #{tpu_custom_call.1} parent=43 // pred_fallthru
          _
        // Predicated region
        $region53: #{tpu_custom_call.1} parent=43 // pred_check
          %p2063 = pneg %p227
        $region54: #{tpu_custom_call.1} parent=43 // pred_check_branch
          %2065 = sbr.rel (%p2063) target = $region56
        $region55: #{tpu_custom_call.1} parent=43 // pred_region
          %s2067 = ssub.s32 16, 16
          %2068 = vsyncadd %s2033, %s2067
          %s2069 = smul.addr %s26, 16
          %s2070 = scalar_lea.hbm %s8, %s2069
          %s2072 = sshll.u32 %s2035, 4
          %s2073 = int_to_ptr.vmem [resolvable:$true] %s2072
          %2075 = dma.vmem_to_hbm [thread:$0]  %s2073, 16, %s2070, %s2033
        $region56: #{tpu_custom_call.1} parent=43 // pred_fallthru
          _
      $region44: #{tpu_custom_call.1} parent=5 // pred_fallthru
        _
      %p2076 = scmp.le.s32.totalorder 2, %s21
      // Predicated region
      $region57: #{tpu_custom_call.1} parent=5 // pred_check
        %p2077 = pneg %p2076
      $region58: #{tpu_custom_call.1} parent=5 // pred_check_branch
        %2079 = sbr.rel (%p2077) target = $region60
      $region59: #{tpu_custom_call.1} parent=5 // pred_region
        %s2080 = ssub.s32 %s21, 2
        // Predicated region
        $region61: #{tpu_custom_call.1} parent=59 // pred_check
          %p2081 = pneg %p181
        $region62: #{tpu_custom_call.1} parent=59 // pred_check_branch
          %2083 = sbr.rel (%p2081) target = $region64
        $region63: #{tpu_custom_call.1} parent=59 // pred_region
          %s2084 = sand.u32 %s166, 1
          %s2085 = scalar_lea.sflag [#allocation3], %s2084
          %s2086 = sand.u32 %s166, 1
          %s2087 = smul.addr %s2086, 24
          %s2088 = scalar_lea.vmem [#allocation2], %s2087
          %2089 = dma.done %s2085, 384
        $region64: #{tpu_custom_call.1} parent=59 // pred_fallthru
          _
        // Predicated region
        $region65: #{tpu_custom_call.1} parent=59 // pred_check
          %p2090 = pneg %p207
        $region66: #{tpu_custom_call.1} parent=59 // pred_check_branch
          %2092 = sbr.rel (%p2090) target = $region68
        $region67: #{tpu_custom_call.1} parent=59 // pred_region
          %s2093 = sand.u32 %s27, 1
          %s2094 = scalar_lea.sflag [#allocation5], %s2093
          %s2095 = sand.u32 %s192, 1
          %s2096 = scalar_lea.vmem [#allocation4], %s2095
          %2097 = dma.done %s2094, 16
        $region68: #{tpu_custom_call.1} parent=59 // pred_fallthru
          _
        // Predicated region
        $region69: #{tpu_custom_call.1} parent=59 // pred_check
          %p2098 = pneg %p233
        $region70: #{tpu_custom_call.1} parent=59 // pred_check_branch
          %2100 = sbr.rel (%p2098) target = $region72
        $region71: #{tpu_custom_call.1} parent=59 // pred_region
          %s2101 = sand.u32 %s27, 1
          %s2102 = scalar_lea.sflag [#allocation5], %s2101
          %s2103 = sand.u32 %s218, 1
          %s2104 = scalar_lea.vmem [#allocation6], %s2103
          %2105 = dma.done %s2102, 16
        $region72: #{tpu_custom_call.1} parent=59 // pred_fallthru
          _
      $region60: #{tpu_custom_call.1} parent=5 // pred_fallthru
        _
    $region6: #{tpu_custom_call.1} parent=1 // loop_footer
      %s25 = sadd.s32 1, %s21
    $region7: #{tpu_custom_call.1} parent=1 // loop_footer_branch
      %20 = sbr.rel target = $region3
    $region8: #{tpu_custom_call.1} parent=1 // loop_exit
      _
    %2106 = vsyncpa [#allocation3], 1
    %s2107 = scalar_lea.sflag [#allocation3], 1
    %2108 = vsyncpa %s2107, 1
    %2109 = vsyncpa [#allocation5], 1
    %s2110 = scalar_lea.sflag [#allocation5], 1
    %2111 = vsyncpa %s2110, 1

</llo_original>
